<compile_context>
chip_gen: v5e
topology: v5e:2x2
jax: 0.10.0
libtpu: 0.0.40
codegen_flags: <defaults>
</compile_context>

<pallas_src>
import functools
import math

import jax
import jax.numpy as jnp
from jax.experimental import pallas as pl
from jax.experimental.pallas import tpu as pltpu

KSIZE = 7
PAD = 3


def _build_band(weight, H, W):
    """Fold the conv weights into per-kd band matrices (pure-JAX glue).

    weight: (1, 2, 7, 7, 7) float32.
    Returns band: (7, 2*Hp*Wp, H*W) float32 with
      band[kd, c*Hp*Wp + hp*Wp + wp, h*W + w] = weight[0, c, kd, hp-h, wp-w]
    whenever 0 <= hp-h < 7 and 0 <= wp-w < 7, else 0.
    """
    K = KSIZE
    Hp, Wp = H + 2 * PAD, W + 2 * PAD
    wt = weight[0].astype(jnp.float32)                        # (2, K, K, K)

    kh = jnp.arange(Hp)[:, None] - jnp.arange(H)[None, :]     # (Hp, H) -> kh tap
    kw = jnp.arange(Wp)[:, None] - jnp.arange(W)[None, :]     # (Wp, W) -> kw tap
    kh_ok = (kh >= 0) & (kh < K)
    kw_ok = (kw >= 0) & (kw < K)
    kh_c = jnp.clip(kh, 0, K - 1)
    kw_c = jnp.clip(kw, 0, K - 1)

    band6 = wt[:, :, kh_c][:, :, :, :, kw_c]                  # (2, K, Hp, H, Wp, W)
    mask = kh_ok[None, None, :, :, None, None] & kw_ok[None, None, None, None, :, :]
    band6 = jnp.where(mask, band6, 0.0)
    # (c, kd, hp, h, wp, w) -> (kd, c, hp, wp, h, w) -> (kd, 2*Hp*Wp, H*W)
    band = jnp.transpose(band6, (1, 0, 2, 4, 3, 5)).reshape(K, 2 * Hp * Wp, H * W)
    return band


def _fused_kernel(band_ref, x_ref, o_ref, xp_ref, *, D, H, W):
    # band_ref: (7, 2*Hp*Wp, H*W) f32  (constant block -> resident across grid)
    # x_ref   : (1, C, D, H*W)
    # o_ref   : (1, D, H*W)
    # xp_ref  : VMEM scratch (D+6, 2*Hp*Wp): pooled, zero-padded, channel- and
    #           HW-flattened conv input.
    Hp, Wp = H + 2 * PAD, W + 2 * PAD
    HW = H * W

    # ---- channel pooling: mean + max over C (axis reduce) ------------------
    xb = x_ref[0].astype(jnp.float32)            # (C, D, H*W)
    avg = jnp.mean(xb, axis=0)                   # (D, H*W)
    mx = jnp.max(xb, axis=0)                     # (D, H*W)

    # ---- scatter pooled values into the padded scratch ---------------------
    #   xp[dp, c*Hp*Wp + hp*Wp + wp] = pooled[c, dp-PAD, hp-PAD, wp-PAD]
    # halo stays zero.
    xp_ref[...] = jnp.zeros((D + 2 * PAD, 2 * Hp * Wp), jnp.float32)
    for c, pooled in ((0, avg), (1, mx)):
        for h in range(H):
            lane0 = c * Hp * Wp + (h + PAD) * Wp + PAD
            xp_ref[PAD:PAD + D, lane0:lane0 + W] = pooled[:, h * W:(h + 1) * W]

    # ---- 7x7x7 conv as 7 MXU matmuls (c/kh/kw folded into band) + sigmoid --
    acc = jnp.zeros((D, HW), jnp.float32)
    for kd in range(KSIZE):
        acc = acc + jnp.dot(xp_ref[kd:kd + D, :], band_ref[kd],
                            preferred_element_type=jnp.float32)
    o_ref[0] = jax.nn.sigmoid(acc).astype(o_ref.dtype)


def spatial_attention_3d(x, weight):
    """x: (N, C, D, H, W) f32;  weight: (1, 2, 7, 7, 7) f32 -> (N, 1, D, H, W)."""
    N, C, D, H, W = x.shape
    Hp, Wp = H + 2 * PAD, W + 2 * PAD
    HW = H * W

    band = _build_band(weight, H, W)             # (7, 2*Hp*Wp, H*W)
    x_flat = x.reshape(N, C, D, HW)              # free contiguous reshape

    kernel = functools.partial(_fused_kernel, D=D, H=H, W=W)
    out_flat = pl.pallas_call(
        kernel,
        out_shape=jax.ShapeDtypeStruct((N, D, HW), jnp.float32),
        grid=(N,),
        in_specs=[
            pl.BlockSpec((KSIZE, 2 * Hp * Wp, HW), lambda n: (0, 0, 0)),
            pl.BlockSpec((1, C, D, HW), lambda n: (n, 0, 0, 0)),
        ],
        out_specs=pl.BlockSpec((1, D, HW), lambda n: (n, 0, 0)),
        scratch_shapes=[pltpu.VMEM((D + 2 * PAD, 2 * Hp * Wp), jnp.float32)],
        compiler_params=pltpu.CompilerParams(dimension_semantics=("parallel",)),
    )(band, x_flat)
    return out_flat.reshape(N, 1, D, H, W)


# ----------------------------------------------------------------------------
# Pure-JAX reference (correctness check)
# ----------------------------------------------------------------------------
def _reference(x, weight):
    avg = jnp.mean(x, axis=1, keepdims=True)
    mx = jnp.max(x, axis=1, keepdims=True)
    cat = jnp.concatenate([avg, mx], axis=1)
    conv = jax.lax.conv_general_dilated(
        cat, weight, window_strides=(1, 1, 1),
        padding=[(PAD, PAD)] * 3,
        dimension_numbers=("NCDHW", "OIDHW", "NCDHW"),
    )
    return jax.nn.sigmoid(conv)


if __name__ == "__main__":
    key = jax.random.PRNGKey(0)
    kx, kw = jax.random.split(key)

    # Small shapes consistent with the module: N=2, C=4, D=4, H=8, W=8.
    N, C, D, H, W = 2, 4, 4, 8, 8
    x = jax.random.normal(kx, (N, C, D, H, W), dtype=jnp.float32)

    # Deterministic weight init, conv3d(2 -> 1, k=7, bias=False), kaiming-ish.
    fan_in = 2 * KSIZE * KSIZE * KSIZE
    weight = jax.random.normal(kw, (1, 2, KSIZE, KSIZE, KSIZE), dtype=jnp.float32)
    weight = weight * (1.0 / math.sqrt(fan_in))

    out = spatial_attention_3d(x, weight)
    out = jax.block_until_ready(out)

    ref = _reference(x, weight)
    assert out.shape == (N, 1, D, H, W), out.shape
    # MXU matmuls may run at bf16-pass precision; tolerance still catches any
    # indexing/padding bug (those produce O(1e-1) errors).
    err = float(jnp.max(jnp.abs(out - ref)))
    assert jnp.allclose(out, ref, atol=2e-3, rtol=2e-3), err

    print("KERNEL_OK")
</pallas_src>

<mosaic_0001>
module attributes {stable_mosaic.version = 11 : i64} {
  func.func @_fused_kernel(%arg0: i32, %arg1: memref<7x392x64xf32, #tpu.memory_space<vmem>>, %arg2: memref<1x4x4x64xf32, #tpu.memory_space<vmem>>, %arg3: memref<1x4x64xf32, #tpu.memory_space<vmem>>, %arg4: memref<10x392xf32, #tpu.memory_space<vmem>>) attributes {dimension_semantics = [#tpu.dimension_semantics<parallel>], iteration_bounds = array<i64: 2>, scalar_prefetch = 0 : i64, scratch_operands = 1 : i64, tpu.core_type = #tpu.core_type<tc>, window_params = [{pipeline_mode = #tpu.pipeline_mode<synchronous>, transform_indices = @transform_0, window_bounds = array<i64: 7, 392, 64>}, {transform_indices = @transform_1, window_bounds = array<i64: 1, 4, 4, 64>}, {transform_indices = @transform_2, window_bounds = array<i64: 1, 4, 64>}]} {
    %c0 = arith.constant 0 : index
    %c0_0 = arith.constant 0 : index
    %c0_1 = arith.constant 0 : index
    %c0_2 = arith.constant 0 : index
    %0 = vector.load %arg2[%c0, %c0_0, %c0_1, %c0_2] : memref<1x4x4x64xf32, #tpu.memory_space<vmem>>, vector<1x4x4x64xf32>
    %1 = vector.shape_cast %0 : vector<1x4x4x64xf32> to vector<4x4x64xf32>
    %cst = arith.constant dense<0.000000e+00> : vector<4x64xf32>
    %2 = vector.multi_reduction <add>, %1, %cst [0] : vector<4x4x64xf32> to vector<4x64xf32>
    %cst_3 = arith.constant 4.000000e+00 : f32
    %3 = vector.broadcast %cst_3 : f32 to vector<4x64xf32>
    %4 = arith.divf %2, %3 : vector<4x64xf32>
    %cst_4 = arith.constant dense<0xFF800000> : vector<4x64xf32>
    %5 = vector.multi_reduction <maximumf>, %1, %cst_4 [0] : vector<4x4x64xf32> to vector<4x64xf32>
    %cst_5 = arith.constant 0.000000e+00 : f32
    %6 = vector.broadcast %cst_5 : f32 to vector<10x392xf32>
    %c0_6 = arith.constant 0 : index
    %c0_7 = arith.constant 0 : index
    %7 = vector.load %arg4[%c0_6, %c0_7] : memref<10x392xf32, #tpu.memory_space<vmem>>, vector<10x392xf32>
    tpu.vector_store %arg4[%c0_6, %c0_7], %6 {strides = array<i32>} : memref<10x392xf32, #tpu.memory_space<vmem>>, vector<10x392xf32>,
    %8 = vector.extract_strided_slice %4 {offsets = [0, 0], sizes = [4, 8], strides = [1, 1]} : vector<4x64xf32> to vector<4x8xf32>
    %c3 = arith.constant 3 : index
    %c45 = arith.constant 45 : index
    %9 = vector.load %arg4[%c3, %c45] : memref<10x392xf32, #tpu.memory_space<vmem>>, vector<4x8xf32>
    tpu.vector_store %arg4[%c3, %c45], %8 {strides = array<i32>} : memref<10x392xf32, #tpu.memory_space<vmem>>, vector<4x8xf32>,
    %10 = vector.extract_strided_slice %4 {offsets = [0, 8], sizes = [4, 8], strides = [1, 1]} : vector<4x64xf32> to vector<4x8xf32>
    %c3_8 = arith.constant 3 : index
    %c59 = arith.constant 59 : index
    %11 = vector.load %arg4[%c3_8, %c59] : memref<10x392xf32, #tpu.memory_space<vmem>>, vector<4x8xf32>
    tpu.vector_store %arg4[%c3_8, %c59], %10 {strides = array<i32>} : memref<10x392xf32, #tpu.memory_space<vmem>>, vector<4x8xf32>,
    %12 = vector.extract_strided_slice %4 {offsets = [0, 16], sizes = [4, 8], strides = [1, 1]} : vector<4x64xf32> to vector<4x8xf32>
    %c3_9 = arith.constant 3 : index
    %c73 = arith.constant 73 : index
    %13 = vector.load %arg4[%c3_9, %c73] : memref<10x392xf32, #tpu.memory_space<vmem>>, vector<4x8xf32>
    tpu.vector_store %arg4[%c3_9, %c73], %12 {strides = array<i32>} : memref<10x392xf32, #tpu.memory_space<vmem>>, vector<4x8xf32>,
    %14 = vector.extract_strided_slice %4 {offsets = [0, 24], sizes = [4, 8], strides = [1, 1]} : vector<4x64xf32> to vector<4x8xf32>
    %c3_10 = arith.constant 3 : index
    %c87 = arith.constant 87 : index
    %15 = vector.load %arg4[%c3_10, %c87] : memref<10x392xf32, #tpu.memory_space<vmem>>, vector<4x8xf32>
    tpu.vector_store %arg4[%c3_10, %c87], %14 {strides = array<i32>} : memref<10x392xf32, #tpu.memory_space<vmem>>, vector<4x8xf32>,
    %16 = vector.extract_strided_slice %4 {offsets = [0, 32], sizes = [4, 8], strides = [1, 1]} : vector<4x64xf32> to vector<4x8xf32>
    %c3_11 = arith.constant 3 : index
    %c101 = arith.constant 101 : index
    %17 = vector.load %arg4[%c3_11, %c101] : memref<10x392xf32, #tpu.memory_space<vmem>>, vector<4x8xf32>
    tpu.vector_store %arg4[%c3_11, %c101], %16 {strides = array<i32>} : memref<10x392xf32, #tpu.memory_space<vmem>>, vector<4x8xf32>,
    %18 = vector.extract_strided_slice %4 {offsets = [0, 40], sizes = [4, 8], strides = [1, 1]} : vector<4x64xf32> to vector<4x8xf32>
    %c3_12 = arith.constant 3 : index
    %c115 = arith.constant 115 : index
    %19 = vector.load %arg4[%c3_12, %c115] : memref<10x392xf32, #tpu.memory_space<vmem>>, vector<4x8xf32>
    tpu.vector_store %arg4[%c3_12, %c115], %18 {strides = array<i32>} : memref<10x392xf32, #tpu.memory_space<vmem>>, vector<4x8xf32>,
    %20 = vector.extract_strided_slice %4 {offsets = [0, 48], sizes = [4, 8], strides = [1, 1]} : vector<4x64xf32> to vector<4x8xf32>
    %c3_13 = arith.constant 3 : index
    %c129 = arith.constant 129 : index
    %21 = vector.load %arg4[%c3_13, %c129] : memref<10x392xf32, #tpu.memory_space<vmem>>, vector<4x8xf32>
    tpu.vector_store %arg4[%c3_13, %c129], %20 {strides = array<i32>} : memref<10x392xf32, #tpu.memory_space<vmem>>, vector<4x8xf32>,
    %22 = vector.extract_strided_slice %4 {offsets = [0, 56], sizes = [4, 8], strides = [1, 1]} : vector<4x64xf32> to vector<4x8xf32>
    %c3_14 = arith.constant 3 : index
    %c143 = arith.constant 143 : index
    %23 = vector.load %arg4[%c3_14, %c143] : memref<10x392xf32, #tpu.memory_space<vmem>>, vector<4x8xf32>
    tpu.vector_store %arg4[%c3_14, %c143], %22 {strides = array<i32>} : memref<10x392xf32, #tpu.memory_space<vmem>>, vector<4x8xf32>,
    %24 = vector.extract_strided_slice %5 {offsets = [0, 0], sizes = [4, 8], strides = [1, 1]} : vector<4x64xf32> to vector<4x8xf32>
    %c3_15 = arith.constant 3 : index
    %c241 = arith.constant 241 : index
    %25 = vector.load %arg4[%c3_15, %c241] : memref<10x392xf32, #tpu.memory_space<vmem>>, vector<4x8xf32>
    tpu.vector_store %arg4[%c3_15, %c241], %24 {strides = array<i32>} : memref<10x392xf32, #tpu.memory_space<vmem>>, vector<4x8xf32>,
    %26 = vector.extract_strided_slice %5 {offsets = [0, 8], sizes = [4, 8], strides = [1, 1]} : vector<4x64xf32> to vector<4x8xf32>
    %c3_16 = arith.constant 3 : index
    %c255 = arith.constant 255 : index
    %27 = vector.load %arg4[%c3_16, %c255] : memref<10x392xf32, #tpu.memory_space<vmem>>, vector<4x8xf32>
    tpu.vector_store %arg4[%c3_16, %c255], %26 {strides = array<i32>} : memref<10x392xf32, #tpu.memory_space<vmem>>, vector<4x8xf32>,
    %28 = vector.extract_strided_slice %5 {offsets = [0, 16], sizes = [4, 8], strides = [1, 1]} : vector<4x64xf32> to vector<4x8xf32>
    %c3_17 = arith.constant 3 : index
    %c269 = arith.constant 269 : index
    %29 = vector.load %arg4[%c3_17, %c269] : memref<10x392xf32, #tpu.memory_space<vmem>>, vector<4x8xf32>
    tpu.vector_store %arg4[%c3_17, %c269], %28 {strides = array<i32>} : memref<10x392xf32, #tpu.memory_space<vmem>>, vector<4x8xf32>,
    %30 = vector.extract_strided_slice %5 {offsets = [0, 24], sizes = [4, 8], strides = [1, 1]} : vector<4x64xf32> to vector<4x8xf32>
    %c3_18 = arith.constant 3 : index
    %c283 = arith.constant 283 : index
    %31 = vector.load %arg4[%c3_18, %c283] : memref<10x392xf32, #tpu.memory_space<vmem>>, vector<4x8xf32>
    tpu.vector_store %arg4[%c3_18, %c283], %30 {strides = array<i32>} : memref<10x392xf32, #tpu.memory_space<vmem>>, vector<4x8xf32>,
    %32 = vector.extract_strided_slice %5 {offsets = [0, 32], sizes = [4, 8], strides = [1, 1]} : vector<4x64xf32> to vector<4x8xf32>
    %c3_19 = arith.constant 3 : index
    %c297 = arith.constant 297 : index
    %33 = vector.load %arg4[%c3_19, %c297] : memref<10x392xf32, #tpu.memory_space<vmem>>, vector<4x8xf32>
    tpu.vector_store %arg4[%c3_19, %c297], %32 {strides = array<i32>} : memref<10x392xf32, #tpu.memory_space<vmem>>, vector<4x8xf32>,
    %34 = vector.extract_strided_slice %5 {offsets = [0, 40], sizes = [4, 8], strides = [1, 1]} : vector<4x64xf32> to vector<4x8xf32>
    %c3_20 = arith.constant 3 : index
    %c311 = arith.constant 311 : index
    %35 = vector.load %arg4[%c3_20, %c311] : memref<10x392xf32, #tpu.memory_space<vmem>>, vector<4x8xf32>
    tpu.vector_store %arg4[%c3_20, %c311], %34 {strides = array<i32>} : memref<10x392xf32, #tpu.memory_space<vmem>>, vector<4x8xf32>,
    %36 = vector.extract_strided_slice %5 {offsets = [0, 48], sizes = [4, 8], strides = [1, 1]} : vector<4x64xf32> to vector<4x8xf32>
    %c3_21 = arith.constant 3 : index
    %c325 = arith.constant 325 : index
    %37 = vector.load %arg4[%c3_21, %c325] : memref<10x392xf32, #tpu.memory_space<vmem>>, vector<4x8xf32>
    tpu.vector_store %arg4[%c3_21, %c325], %36 {strides = array<i32>} : memref<10x392xf32, #tpu.memory_space<vmem>>, vector<4x8xf32>,
    %38 = vector.extract_strided_slice %5 {offsets = [0, 56], sizes = [4, 8], strides = [1, 1]} : vector<4x64xf32> to vector<4x8xf32>
    %c3_22 = arith.constant 3 : index
    %c339 = arith.constant 339 : index
    %39 = vector.load %arg4[%c3_22, %c339] : memref<10x392xf32, #tpu.memory_space<vmem>>, vector<4x8xf32>
    tpu.vector_store %arg4[%c3_22, %c339], %38 {strides = array<i32>} : memref<10x392xf32, #tpu.memory_space<vmem>>, vector<4x8xf32>,
    %cst_23 = arith.constant 0.000000e+00 : f32
    %40 = vector.broadcast %cst_23 : f32 to vector<4x64xf32>
    %c0_24 = arith.constant 0 : index
    %c0_25 = arith.constant 0 : index
    %41 = vector.load %arg4[%c0_24, %c0_25] : memref<10x392xf32, #tpu.memory_space<vmem>>, vector<4x392xf32>
    %c0_26 = arith.constant 0 : index
    %c0_27 = arith.constant 0 : index
    %c0_28 = arith.constant 0 : index
    %42 = vector.load %arg1[%c0_26, %c0_27, %c0_28] : memref<7x392x64xf32, #tpu.memory_space<vmem>>, vector<1x392x64xf32>
    %43 = vector.shape_cast %42 : vector<1x392x64xf32> to vector<392x64xf32>
    %cst_29 = arith.constant dense<0.000000e+00> : vector<4x64xf32>
    %44 = tpu.matmul %41, %43, %cst_29 {dimension_numbers = #tpu.dot_dimension_numbers<[1], [0], [0], [1], [0, 0, 1, 1], [], []>} : vector<4x392xf32>, vector<392x64xf32>, vector<4x64xf32> -> vector<4x64xf32>
    %45 = arith.addf %40, %44 : vector<4x64xf32>
    %c1 = arith.constant 1 : index
    %c0_30 = arith.constant 0 : index
    %46 = vector.load %arg4[%c1, %c0_30] : memref<10x392xf32, #tpu.memory_space<vmem>>, vector<4x392xf32>
    %c1_31 = arith.constant 1 : index
    %c0_32 = arith.constant 0 : index
    %c0_33 = arith.constant 0 : index
    %47 = vector.load %arg1[%c1_31, %c0_32, %c0_33] : memref<7x392x64xf32, #tpu.memory_space<vmem>>, vector<1x392x64xf32>
    %48 = vector.shape_cast %47 : vector<1x392x64xf32> to vector<392x64xf32>
    %cst_34 = arith.constant dense<0.000000e+00> : vector<4x64xf32>
    %49 = tpu.matmul %46, %48, %cst_34 {dimension_numbers = #tpu.dot_dimension_numbers<[1], [0], [0], [1], [0, 0, 1, 1], [], []>} : vector<4x392xf32>, vector<392x64xf32>, vector<4x64xf32> -> vector<4x64xf32>
    %50 = arith.addf %45, %49 : vector<4x64xf32>
    %c2 = arith.constant 2 : index
    %c0_35 = arith.constant 0 : index
    %51 = vector.load %arg4[%c2, %c0_35] : memref<10x392xf32, #tpu.memory_space<vmem>>, vector<4x392xf32>
    %c2_36 = arith.constant 2 : index
    %c0_37 = arith.constant 0 : index
    %c0_38 = arith.constant 0 : index
    %52 = vector.load %arg1[%c2_36, %c0_37, %c0_38] : memref<7x392x64xf32, #tpu.memory_space<vmem>>, vector<1x392x64xf32>
    %53 = vector.shape_cast %52 : vector<1x392x64xf32> to vector<392x64xf32>
    %cst_39 = arith.constant dense<0.000000e+00> : vector<4x64xf32>
    %54 = tpu.matmul %51, %53, %cst_39 {dimension_numbers = #tpu.dot_dimension_numbers<[1], [0], [0], [1], [0, 0, 1, 1], [], []>} : vector<4x392xf32>, vector<392x64xf32>, vector<4x64xf32> -> vector<4x64xf32>
    %55 = arith.addf %50, %54 : vector<4x64xf32>
    %c3_40 = arith.constant 3 : index
    %c0_41 = arith.constant 0 : index
    %56 = vector.load %arg4[%c3_40, %c0_41] : memref<10x392xf32, #tpu.memory_space<vmem>>, vector<4x392xf32>
    %c3_42 = arith.constant 3 : index
    %c0_43 = arith.constant 0 : index
    %c0_44 = arith.constant 0 : index
    %57 = vector.load %arg1[%c3_42, %c0_43, %c0_44] : memref<7x392x64xf32, #tpu.memory_space<vmem>>, vector<1x392x64xf32>
    %58 = vector.shape_cast %57 : vector<1x392x64xf32> to vector<392x64xf32>
    %cst_45 = arith.constant dense<0.000000e+00> : vector<4x64xf32>
    %59 = tpu.matmul %56, %58, %cst_45 {dimension_numbers = #tpu.dot_dimension_numbers<[1], [0], [0], [1], [0, 0, 1, 1], [], []>} : vector<4x392xf32>, vector<392x64xf32>, vector<4x64xf32> -> vector<4x64xf32>
    %60 = arith.addf %55, %59 : vector<4x64xf32>
    %c4 = arith.constant 4 : index
    %c0_46 = arith.constant 0 : index
    %61 = vector.load %arg4[%c4, %c0_46] : memref<10x392xf32, #tpu.memory_space<vmem>>, vector<4x392xf32>
    %c4_47 = arith.constant 4 : index
    %c0_48 = arith.constant 0 : index
    %c0_49 = arith.constant 0 : index
    %62 = vector.load %arg1[%c4_47, %c0_48, %c0_49] : memref<7x392x64xf32, #tpu.memory_space<vmem>>, vector<1x392x64xf32>
    %63 = vector.shape_cast %62 : vector<1x392x64xf32> to vector<392x64xf32>
    %cst_50 = arith.constant dense<0.000000e+00> : vector<4x64xf32>
    %64 = tpu.matmul %61, %63, %cst_50 {dimension_numbers = #tpu.dot_dimension_numbers<[1], [0], [0], [1], [0, 0, 1, 1], [], []>} : vector<4x392xf32>, vector<392x64xf32>, vector<4x64xf32> -> vector<4x64xf32>
    %65 = arith.addf %60, %64 : vector<4x64xf32>
    %c5 = arith.constant 5 : index
    %c0_51 = arith.constant 0 : index
    %66 = vector.load %arg4[%c5, %c0_51] : memref<10x392xf32, #tpu.memory_space<vmem>>, vector<4x392xf32>
    %c5_52 = arith.constant 5 : index
    %c0_53 = arith.constant 0 : index
    %c0_54 = arith.constant 0 : index
    %67 = vector.load %arg1[%c5_52, %c0_53, %c0_54] : memref<7x392x64xf32, #tpu.memory_space<vmem>>, vector<1x392x64xf32>
    %68 = vector.shape_cast %67 : vector<1x392x64xf32> to vector<392x64xf32>
    %cst_55 = arith.constant dense<0.000000e+00> : vector<4x64xf32>
    %69 = tpu.matmul %66, %68, %cst_55 {dimension_numbers = #tpu.dot_dimension_numbers<[1], [0], [0], [1], [0, 0, 1, 1], [], []>} : vector<4x392xf32>, vector<392x64xf32>, vector<4x64xf32> -> vector<4x64xf32>
    %70 = arith.addf %65, %69 : vector<4x64xf32>
    %c6 = arith.constant 6 : index
    %c0_56 = arith.constant 0 : index
    %71 = vector.load %arg4[%c6, %c0_56] : memref<10x392xf32, #tpu.memory_space<vmem>>, vector<4x392xf32>
    %c6_57 = arith.constant 6 : index
    %c0_58 = arith.constant 0 : index
    %c0_59 = arith.constant 0 : index
    %72 = vector.load %arg1[%c6_57, %c0_58, %c0_59] : memref<7x392x64xf32, #tpu.memory_space<vmem>>, vector<1x392x64xf32>
    %73 = vector.shape_cast %72 : vector<1x392x64xf32> to vector<392x64xf32>
    %cst_60 = arith.constant dense<0.000000e+00> : vector<4x64xf32>
    %74 = tpu.matmul %71, %73, %cst_60 {dimension_numbers = #tpu.dot_dimension_numbers<[1], [0], [0], [1], [0, 0, 1, 1], [], []>} : vector<4x392xf32>, vector<392x64xf32>, vector<4x64xf32> -> vector<4x64xf32>
    %75 = arith.addf %70, %74 : vector<4x64xf32>
    %76 = arith.negf %75 : vector<4x64xf32>
    %77 = math.exp %76 : vector<4x64xf32>
    %cst_61 = arith.constant 1.000000e+00 : f32
    %78 = vector.broadcast %cst_61 : f32 to vector<4x64xf32>
    %79 = arith.addf %78, %77 : vector<4x64xf32>
    %80 = arith.divf %78, %79 : vector<4x64xf32>
    %c0_62 = arith.constant 0 : index
    %c0_63 = arith.constant 0 : index
    %c0_64 = arith.constant 0 : index
    %81 = vector.load %arg3[%c0_62, %c0_63, %c0_64] : memref<1x4x64xf32, #tpu.memory_space<vmem>>, vector<1x4x64xf32>
    %82 = vector.shape_cast %81 : vector<1x4x64xf32> to vector<4x64xf32>
    %83 = vector.shape_cast %80 : vector<4x64xf32> to vector<1x4x64xf32>
    tpu.vector_store %arg3[%c0_62, %c0_63, %c0_64], %83 {strides = array<i32>} : memref<1x4x64xf32, #tpu.memory_space<vmem>>, vector<1x4x64xf32>,
    return
  }
  func.func @transform_0(%arg0: i32) -> (i32, i32, i32) {
    %c0_i32 = arith.constant 0 : i32
    %c0_i32_0 = arith.constant 0 : i32
    %c0_i32_1 = arith.constant 0 : i32
    %c0_i32_2 = arith.constant 0 : i32
    return %c0_i32, %c0_i32_0, %c0_i32_1 : i32, i32, i32
  }
  func.func @transform_1(%arg0: i32) -> (i32, i32, i32, i32) {
    %c0_i32 = arith.constant 0 : i32
    %c0_i32_0 = arith.constant 0 : i32
    %c0_i32_1 = arith.constant 0 : i32
    %c0_i32_2 = arith.constant 0 : i32
    return %arg0, %c0_i32, %c0_i32_0, %c0_i32_1 : i32, i32, i32, i32
  }
  func.func @transform_2(%arg0: i32) -> (i32, i32, i32) {
    %c0_i32 = arith.constant 0 : i32
    %c0_i32_0 = arith.constant 0 : i32
    %c0_i32_1 = arith.constant 0 : i32
    return %arg0, %c0_i32, %c0_i32_0 : i32, i32, i32
  }
}

</mosaic_0001>

<llo_original>
// kernel: tpu_custom_call.1
$region0: #{tpu_custom_call.1}
  #allocation0 [shape = 'u32[]', space=smem, size = 0x4, offset = 0x4, fixed_abs, tag = 'smem constant byte address 0x4 - core index']
  #allocation1 [shape = 'u32[72,128]{1,0:T(1,128)}', space=vmem, size = 0x9000, scoped, tag = 'internal scratch']
  #allocation2 [shape = 'f32[10,392]{1,0:T(8,128)}', space=vmem, size = 0x8000, scoped, tag = 'scratch operand']
  %s0 = inlined_call_operand.vmem [shape: f32[7,392,64], index: 0, kind: input, shape index: {}]
  %s1 = inlined_call_operand.vmem [shape: f32[2,4,4,64], index: 1, kind: input, shape index: {}]
  %s2 = inlined_call_operand.hbm [shape: f32[2,4,64], index: 2, kind: output, shape index: {}]
  %s3 = sld [smem:[#allocation0]]
  $region41: #{tpu_custom_call.1} parent=0
    _
  %s5 = ssub.s32 1, %s3
  %s6 = scalar_select 0, %s5, %s3
  $region1: #{tpu_custom_call.1} parent=0
    #allocation3 [shape = 'u8[4096]{0}', space=vmem, size = 0x1000, scoped, tag = 'output window, operand 0']
    #allocation4 [shape = 's32[2]{0}', space=sflag, size = 0x8, scoped, tag = 'scoped memory for tpu_custom_call.1']
    %7 = vsyncpa [#allocation4], 0
    %s8 = scalar_lea.sflag [#allocation4], 1
    %9 = vsyncpa %s8, 0
    loop: start=0, step=1, limit=4
    $region2: #{tpu_custom_call.1} parent=1 // loop_pre_header
      _
    $region3: #{tpu_custom_call.1} parent=1 // loop_header
      %s11 = sphi 0, %s15
      %p12 = scmp.ge.s32.totalorder %s11, 4
      %s19 = sphi 0, %s19
      %s21 = sphi 0, %s19
      %s22 = sphi 0, %s21
      %s36 = sphi 0, %s22
      %s42 = sphi 0, %s44
      %s45 = sphi 0, %s42
      %s46 = sphi 0, %s45
      %s62 = sphi 0, %s46
      %s68 = sphi 0, %s70
      %s71 = sphi 0, %s68
      %s72 = sphi 0, %s71
      %s88 = sphi 0, %s72
    $region4: #{tpu_custom_call.1} parent=1 // loop_header_branch
      %14 = sbr.rel (%p12) target = $region8
    $region5: #{tpu_custom_call.1} parent=1 // loop_body
      %s16 = ssub.s32 %s11, 1
      %s17 = ssub.s32 %s11, 2
      %s18 = sadd.s32 %s11, 1
      %s20 = sadd.s32 %s19, 1
      %p23 = scmp.eq.s32.totalorder %s11, 1
      %p24 = scmp.ne.s32.totalorder %s19, %s21
      %p25 = scmp.eq.s32.totalorder %s11, 0
      %p26 = por %p24, %p25
      %p27 = scmp.ne.s32.totalorder %s19, %s21
      %p28 = scmp.eq.s32.totalorder %s16, 1
      %p29 = por %p27, %p28
      %p30 = scmp.ne.s32.totalorder %s21, %s22
      %p31 = scmp.eq.s32.totalorder %s16, 0
      %p32 = por %p30, %p31
      %p33 = scmp.ne.s32.totalorder %s21, %s22
      %p34 = scmp.eq.s32.totalorder %s17, 1
      %p35 = por %p33, %p34
      %p37 = scmp.ne.s32.totalorder %s22, %s36
      %p38 = scmp.eq.s32.totalorder %s17, 0
      %p39 = por %p37, %p38
      %s40 = ssub.s32 %s11, %s18
      %p41 = scmp.eq.s32.totalorder %s40, 0
      %s43 = sadd.s32 %s42, 1
      %s44 = scalar_select %p41, %s42, %s43
      %p47 = pneg %p41
      %p48 = scmp.eq.s32.totalorder %s11, 1
      %p49 = por %p47, %p48
      %p50 = scmp.ne.s32.totalorder %s42, %s45
      %p51 = scmp.eq.s32.totalorder %s11, 0
      %p52 = por %p50, %p51
      %p53 = scmp.ne.s32.totalorder %s42, %s45
      %p54 = scmp.eq.s32.totalorder %s16, 1
      %p55 = por %p53, %p54
      %p56 = scmp.ne.s32.totalorder %s45, %s46
      %p57 = scmp.eq.s32.totalorder %s16, 0
      %p58 = por %p56, %p57
      %p59 = scmp.ne.s32.totalorder %s45, %s46
      %p60 = scmp.eq.s32.totalorder %s17, 1
      %p61 = por %p59, %p60
      %p63 = scmp.ne.s32.totalorder %s46, %s62
      %p64 = scmp.eq.s32.totalorder %s17, 0
      %p65 = por %p63, %p64
      %s66 = ssub.s32 %s11, %s18
      %p67 = scmp.eq.s32.totalorder %s66, 0
      %s69 = sadd.s32 %s68, 1
      %s70 = scalar_select %p67, %s68, %s69
      %p73 = pneg %p67
      %p74 = scmp.eq.s32.totalorder %s11, 1
      %p75 = por %p73, %p74
      %p76 = scmp.ne.s32.totalorder %s68, %s71
      %p77 = scmp.eq.s32.totalorder %s11, 0
      %p78 = por %p76, %p77
      %p79 = scmp.ne.s32.totalorder %s68, %s71
      %p80 = scmp.eq.s32.totalorder %s16, 1
      %p81 = por %p79, %p80
      %p82 = scmp.ne.s32.totalorder %s71, %s72
      %p83 = scmp.eq.s32.totalorder %s16, 0
      %p84 = por %p82, %p83
      %p85 = scmp.ne.s32.totalorder %s71, %s72
      %p86 = scmp.eq.s32.totalorder %s17, 1
      %p87 = por %p85, %p86
      %p89 = scmp.ne.s32.totalorder %s72, %s88
      %p90 = scmp.eq.s32.totalorder %s17, 0
      %p91 = por %p89, %p90
      %p92 = scmp.le.s32.totalorder 1, %s11
      %p93 = scmp.lt.s32.totalorder %s11, 3
      %p94 = pnand %p92, %p93
      %p95 = pneg %p94
      // Predicated region
      $region9: #{tpu_custom_call.1} parent=5 // pred_check
        _
      $region10: #{tpu_custom_call.1} parent=5 // pred_check_branch
        %97 = sbr.rel (%p94) target = $region12
      $region11: #{tpu_custom_call.1} parent=5 // pred_region
        %s98 = ssub.s32 %s11, 1
        // Predicated region
        $region13: #{tpu_custom_call.1} parent=11 // pred_check
          %p99 = pneg %p32
        $region14: #{tpu_custom_call.1} parent=11 // pred_check_branch
          %101 = sbr.rel (%p99) target = $region16
        $region15: #{tpu_custom_call.1} parent=11 // pred_region
          _
        $region16: #{tpu_custom_call.1} parent=11 // pred_fallthru
          _
      $region12: #{tpu_custom_call.1} parent=5 // pred_fallthru
        _
      %p102 = scmp.lt.s32.totalorder %s11, 2
      // Predicated region
      $region17: #{tpu_custom_call.1} parent=5 // pred_check
        %p103 = pneg %p102
      $region18: #{tpu_custom_call.1} parent=5 // pred_check_branch
        %105 = sbr.rel (%p103) target = $region20
      $region19: #{tpu_custom_call.1} parent=5 // pred_region
        // Predicated region
        $region21: #{tpu_custom_call.1} parent=19 // pred_check
          %p106 = pneg %p52
        $region22: #{tpu_custom_call.1} parent=19 // pred_check_branch
          %108 = sbr.rel (%p106) target = $region24
        $region23: #{tpu_custom_call.1} parent=19 // pred_region
          %p109 = scmp.lt.s32.totalorder %s11, 1
          %s110 = scalar_select %p109, %s11, 1
          %s111 = smul.addr %s110, 4
          %s112 = smul.addr %s111, 4
          %s113 = scalar_lea.vmem %s1, %s112
        $region24: #{tpu_custom_call.1} parent=19 // pred_fallthru
          _
      $region20: #{tpu_custom_call.1} parent=5 // pred_fallthru
        _
      %p114 = scmp.le.s32.totalorder 1, %s11
      %p115 = scmp.lt.s32.totalorder %s11, 3
      %p116 = pnand %p114, %p115
      %p117 = pneg %p116
      // Predicated region
      $region25: #{tpu_custom_call.1} parent=5 // pred_check
        _
      $region26: #{tpu_custom_call.1} parent=5 // pred_check_branch
        %119 = sbr.rel (%p116) target = $region28
      $region27: #{tpu_custom_call.1} parent=5 // pred_region
        %s120 = ssub.s32 %s11, 1
        %p121 = pneg %p32
        %p122 = pneg %p29
        %p123 = scmp.lt.s32.totalorder %s16, 1
        %s124 = scalar_select %p123, %s16, 1
        %s125 = smul.addr %s124, 4
        %s126 = smul.addr %s125, 4
        %s127 = scalar_lea.vmem %s1, %s126
        %p128 = pneg %p58
        %p129 = pneg %p55
        %p130 = pneg %p84
        %p131 = pneg %p81
        %s132 = sand.u32 %s71, 1
        %s133 = scalar_lea.sflag [#allocation4], %s132
        %s134 = sand.u32 %s71, 1
        %s135 = smul.addr %s134, 4
        %s136 = scalar_lea.vmem [#allocation3], %s135
        %p137 = scmp.lt.s32.totalorder %s16, 1
        %s138 = scalar_select %p137, %s16, 1
        %s139 = smul.addr %s138, 4
        %s140 = smul.addr %s139, 4
        %s141 = scalar_lea.vmem %s1, %s140
        %v142 = vld [vmem:[%s141] sm:$0xf]
        %v143 = vld [vmem:[%s141 + $0x4] sm:$0xf]
        %v144 = vld [vmem:[%s141 + $0x8] sm:$0xf]
        %v145 = vld [vmem:[%s141 + $0xc] sm:$0xf]
        %vm146 = vcmask 519168
        %v147 = vsel %vm146, %v142, 0.0
        %v148 = vsel %vm146, %v143, 0.0
        %v149 = vadd.f32 %v147, %v148
        %v150 = vsel %vm146, %v144, 0.0
        %v151 = vadd.f32 %v149, %v150
        %v152 = vsel %vm146, %v145, 0.0
        %v153 = vadd.f32 %v151, %v152
        %v154 = vrcp.pop 4.0
        %v155 = vmul.f32 4.0, %v154
        %v156 = vsub.f32 1.0, %v155
        %v157 = vmul.f32 %v154, %v156
        %v158 = vadd.f32 %v154, %v157
        %vm159 = vweird.f32 %v154
        %v160 = vsel %vm159, %v154, %v158
        %v161 = vmul.f32 %v153, %v160
        %v162 = vsel %vm146, %v142, -inf
        %v163 = vsel %vm146, %v143, -inf
        %v164 = vsel %vm146, %v144, -inf
        %v165 = vsel %vm146, %v145, -inf
        %v166 = vmax.f32 %v162, %v163
        %v167 = vmax.f32 %v164, %v165
        %v168 = vmax.f32 %v166, %v167
        %169 = vst [vmem:[#allocation2] sm:$0xff] 0.0
        %170 = vst [vmem:[#allocation2 + $0x8] sm:$0xff] 0.0
        %171 = vst [vmem:[#allocation2 + $0x10] sm:$0xff] 0.0
        %vm172 = vcmask 64512
        %173 = vst.msk [vmem:[#allocation2 + $0x18] sm:$0xff] %vm172, 0.0
        %174 = vst [vmem:[#allocation2 + $0x20] sm:$0x3] 0.0
        %175 = vst [vmem:[#allocation2 + $0x28] sm:$0x3] 0.0
        %176 = vst [vmem:[#allocation2 + $0x30] sm:$0x3] 0.0
        %vm177 = vcmask 58368
        %178 = vst.msk [vmem:[#allocation2 + $0x38] sm:$0x3] %vm177, 0.0
        %v180 = vrot.slane %v161, 5
        %181 = vrot.lane.b32.xlu0 %v180, 45
        %v182 = vpop.permute.xlu0 %181
        %vm184 = vcmask 432491
        %185 = vst.msk [vmem:[#allocation2] sm:$0x78] %vm184, %v182
        %186 = vrot.lane.b32.xlu0 %v180, 51
        %v187 = vpop.permute.xlu0 %186
        %vm189 = vcmask 547291
        %190 = vst.msk [vmem:[#allocation2] sm:$0x78] %vm189, %v187
        %191 = vrot.lane.b32.xlu0 %v180, 57
        %v192 = vpop.permute.xlu0 %191
        %vm194 = vcmask 662091
        %195 = vst.msk [vmem:[#allocation2] sm:$0x78] %vm194, %v192
        %196 = vrot.lane.b32.xlu0 %v180, 63
        %v197 = vpop.permute.xlu0 %196
        %vm199 = vcmask 776891
        %200 = vst.msk [vmem:[#allocation2] sm:$0x78] %vm199, %v197
        %201 = vrot.lane.b32.xlu0 %v180, 69
        %v202 = vpop.permute.xlu0 %201
        %vm204 = vcmask 891691
        %205 = vst.msk [vmem:[#allocation2] sm:$0x78] %vm204, %v202
        %206 = vrot.lane.b32.xlu0 %v180, 75
        %v207 = vpop.permute.xlu0 %206
        %vm209 = vcmask 1006491
        %210 = vst.msk [vmem:[#allocation2] sm:$0x78] %vm209, %v207
        %211 = vrot.lane.b32.xlu0 %v180, 81
        %v212 = vpop.permute.xlu0 %211
        %vm214 = vcmask 71691
        %215 = vst.msk [vmem:[#allocation2 + $0x8] sm:$0x78] %vm214, %v212
        %216 = vrot.lane.b32.xlu0 %v180, 87
        %v217 = vpop.permute.xlu0 %216
        %vm219 = vcmask 186491
        %220 = vst.msk [vmem:[#allocation2 + $0x8] sm:$0x78] %vm219, %v217
        %v222 = vrot.slane %v168, 5
        %223 = vrot.lane.b32.xlu0 %v222, 113
        %v224 = vpop.permute.xlu0 %223
        %vm226 = vcmask 990091
        %227 = vst.msk [vmem:[#allocation2 + $0x8] sm:$0x78] %vm226, %v224
        %228 = vrot.lane.b32.xlu0 %v222, 119
        %v229 = vpop.permute.xlu0 %228
        %vm231 = vcmask 1047547
        %232 = vst.msk [vmem:[#allocation2 + $0x8] sm:$0x78] %vm231, %v229
        %vm233 = vcmask 55299
        %234 = vst.msk [vmem:[#allocation2 + $0x10] sm:$0x78] %vm233, %v229
        %235 = vrot.lane.b32.xlu0 %v222, 125
        %v236 = vpop.permute.xlu0 %235
        %vm238 = vcmask 170091
        %239 = vst.msk [vmem:[#allocation2 + $0x10] sm:$0x78] %vm238, %v236
        %240 = vrot.lane.b32.xlu0 %v222, 3
        %v241 = vpop.permute.xlu0 %240
        %vm243 = vcmask 284891
        %244 = vst.msk [vmem:[#allocation2 + $0x10] sm:$0x78] %vm243, %v241
        %245 = vrot.lane.b32.xlu0 %v222, 9
        %v246 = vpop.permute.xlu0 %245
        %vm248 = vcmask 399691
        %249 = vst.msk [vmem:[#allocation2 + $0x10] sm:$0x78] %vm248, %v246
        %250 = vrot.lane.b32.xlu0 %v222, 15
        %v251 = vpop.permute.xlu0 %250
        %vm253 = vcmask 514491
        %254 = vst.msk [vmem:[#allocation2 + $0x10] sm:$0x78] %vm253, %v251
        %255 = vrot.lane.b32.xlu0 %v222, 21
        %v256 = vpop.permute.xlu0 %255
        %vm258 = vcmask 629291
        %259 = vst.msk [vmem:[#allocation2 + $0x10] sm:$0x78] %vm258, %v256
        %260 = vrot.lane.b32.xlu0 %v222, 27
        %v261 = vpop.permute.xlu0 %260
        %vm263 = vcmask 744091
        %264 = vst.msk [vmem:[#allocation2 + $0x10] sm:$0x78] %vm263, %v261
        %v265 = vld [vmem:[#allocation2] sm:$0xf]
        %v266 = vld [vmem:[#allocation2 + $0x8] sm:$0xf]
        %v267 = vld [vmem:[#allocation2 + $0x10] sm:$0xf]
        %v268 = vld [vmem:[#allocation2 + $0x18] sm:$0xf]
        %v269 = vld [vmem:[%s0] sm:$0xff]
        %v270 = vld [vmem:[%s0 + $0x8] sm:$0xff]
        %v271 = vld [vmem:[%s0 + $0x10] sm:$0xff]
        %v272 = vld [vmem:[%s0 + $0x18] sm:$0xff]
        %v273 = vld [vmem:[%s0 + $0x20] sm:$0xff]
        %v274 = vld [vmem:[%s0 + $0x28] sm:$0xff]
        %v275 = vld [vmem:[%s0 + $0x30] sm:$0xff]
        %v276 = vld [vmem:[%s0 + $0x38] sm:$0xff]
        %v277 = vld [vmem:[%s0 + $0x40] sm:$0xff]
        %v278 = vld [vmem:[%s0 + $0x48] sm:$0xff]
        %v279 = vld [vmem:[%s0 + $0x50] sm:$0xff]
        %v280 = vld [vmem:[%s0 + $0x58] sm:$0xff]
        %v281 = vld [vmem:[%s0 + $0x60] sm:$0xff]
        %v282 = vld [vmem:[%s0 + $0x68] sm:$0xff]
        %v283 = vld [vmem:[%s0 + $0x70] sm:$0xff]
        %v284 = vld [vmem:[%s0 + $0x78] sm:$0xff]
        %v285 = vld [vmem:[%s0 + $0x80] sm:$0xff]
        %v286 = vld [vmem:[%s0 + $0x88] sm:$0xff]
        %v287 = vld [vmem:[%s0 + $0x90] sm:$0xff]
        %v288 = vld [vmem:[%s0 + $0x98] sm:$0xff]
        %v289 = vld [vmem:[%s0 + $0xa0] sm:$0xff]
        %v290 = vld [vmem:[%s0 + $0xa8] sm:$0xff]
        %v291 = vld [vmem:[%s0 + $0xb0] sm:$0xff]
        %v292 = vld [vmem:[%s0 + $0xb8] sm:$0xff]
        %v293 = vld [vmem:[%s0 + $0xc0] sm:$0xff]
        %v294 = vld [vmem:[%s0 + $0xc8] sm:$0xff]
        %v295 = vld [vmem:[%s0 + $0xd0] sm:$0xff]
        %v296 = vld [vmem:[%s0 + $0xd8] sm:$0xff]
        %v297 = vld [vmem:[%s0 + $0xe0] sm:$0xff]
        %v298 = vld [vmem:[%s0 + $0xe8] sm:$0xff]
        %v299 = vld [vmem:[%s0 + $0xf0] sm:$0xff]
        %v300 = vld [vmem:[%s0 + $0xf8] sm:$0xff]
        %v301 = vld [vmem:[%s0 + $0x100] sm:$0xff]
        %v302 = vld [vmem:[%s0 + $0x108] sm:$0xff]
        %v303 = vld [vmem:[%s0 + $0x110] sm:$0xff]
        %v304 = vld [vmem:[%s0 + $0x118] sm:$0xff]
        %v305 = vld [vmem:[%s0 + $0x120] sm:$0xff]
        %v306 = vld [vmem:[%s0 + $0x128] sm:$0xff]
        %v307 = vld [vmem:[%s0 + $0x130] sm:$0xff]
        %v308 = vld [vmem:[%s0 + $0x138] sm:$0xff]
        %v309 = vld [vmem:[%s0 + $0x140] sm:$0xff]
        %v310 = vld [vmem:[%s0 + $0x148] sm:$0xff]
        %v311 = vld [vmem:[%s0 + $0x150] sm:$0xff]
        %v312 = vld [vmem:[%s0 + $0x158] sm:$0xff]
        %v313 = vld [vmem:[%s0 + $0x160] sm:$0xff]
        %v314 = vld [vmem:[%s0 + $0x168] sm:$0xff]
        %v315 = vld [vmem:[%s0 + $0x170] sm:$0xff]
        %v316 = vld [vmem:[%s0 + $0x178] sm:$0xff]
        %v317 = vld [vmem:[%s0 + $0x180] sm:$0xff]
        %v318 = vld [vmem:[#allocation2] sm:$0x1e]
        %v319 = vld [vmem:[#allocation2 + $0x8] sm:$0x1e]
        %v320 = vld [vmem:[#allocation2 + $0x10] sm:$0x1e]
        %v321 = vld [vmem:[#allocation2 + $0x18] sm:$0x1e]
        %s322 = scalar_lea.vmem %s0, 392
        %v323 = vld [vmem:[%s322] sm:$0xff]
        %v324 = vld [vmem:[%s322 + $0x8] sm:$0xff]
        %v325 = vld [vmem:[%s322 + $0x10] sm:$0xff]
        %v326 = vld [vmem:[%s322 + $0x18] sm:$0xff]
        %v327 = vld [vmem:[%s322 + $0x20] sm:$0xff]
        %v328 = vld [vmem:[%s322 + $0x28] sm:$0xff]
        %v329 = vld [vmem:[%s322 + $0x30] sm:$0xff]
        %v330 = vld [vmem:[%s322 + $0x38] sm:$0xff]
        %v331 = vld [vmem:[%s322 + $0x40] sm:$0xff]
        %v332 = vld [vmem:[%s322 + $0x48] sm:$0xff]
        %v333 = vld [vmem:[%s322 + $0x50] sm:$0xff]
        %v334 = vld [vmem:[%s322 + $0x58] sm:$0xff]
        %v335 = vld [vmem:[%s322 + $0x60] sm:$0xff]
        %v336 = vld [vmem:[%s322 + $0x68] sm:$0xff]
        %v337 = vld [vmem:[%s322 + $0x70] sm:$0xff]
        %v338 = vld [vmem:[%s322 + $0x78] sm:$0xff]
        %v339 = vld [vmem:[%s322 + $0x80] sm:$0xff]
        %v340 = vld [vmem:[%s322 + $0x88] sm:$0xff]
        %v341 = vld [vmem:[%s322 + $0x90] sm:$0xff]
        %v342 = vld [vmem:[%s322 + $0x98] sm:$0xff]
        %v343 = vld [vmem:[%s322 + $0xa0] sm:$0xff]
        %v344 = vld [vmem:[%s322 + $0xa8] sm:$0xff]
        %v345 = vld [vmem:[%s322 + $0xb0] sm:$0xff]
        %v346 = vld [vmem:[%s322 + $0xb8] sm:$0xff]
        %v347 = vld [vmem:[%s322 + $0xc0] sm:$0xff]
        %v348 = vld [vmem:[%s322 + $0xc8] sm:$0xff]
        %v349 = vld [vmem:[%s322 + $0xd0] sm:$0xff]
        %v350 = vld [vmem:[%s322 + $0xd8] sm:$0xff]
        %v351 = vld [vmem:[%s322 + $0xe0] sm:$0xff]
        %v352 = vld [vmem:[%s322 + $0xe8] sm:$0xff]
        %v353 = vld [vmem:[%s322 + $0xf0] sm:$0xff]
        %v354 = vld [vmem:[%s322 + $0xf8] sm:$0xff]
        %v355 = vld [vmem:[%s322 + $0x100] sm:$0xff]
        %v356 = vld [vmem:[%s322 + $0x108] sm:$0xff]
        %v357 = vld [vmem:[%s322 + $0x110] sm:$0xff]
        %v358 = vld [vmem:[%s322 + $0x118] sm:$0xff]
        %v359 = vld [vmem:[%s322 + $0x120] sm:$0xff]
        %v360 = vld [vmem:[%s322 + $0x128] sm:$0xff]
        %v361 = vld [vmem:[%s322 + $0x130] sm:$0xff]
        %v362 = vld [vmem:[%s322 + $0x138] sm:$0xff]
        %v363 = vld [vmem:[%s322 + $0x140] sm:$0xff]
        %v364 = vld [vmem:[%s322 + $0x148] sm:$0xff]
        %v365 = vld [vmem:[%s322 + $0x150] sm:$0xff]
        %v366 = vld [vmem:[%s322 + $0x158] sm:$0xff]
        %v367 = vld [vmem:[%s322 + $0x160] sm:$0xff]
        %v368 = vld [vmem:[%s322 + $0x168] sm:$0xff]
        %v369 = vld [vmem:[%s322 + $0x170] sm:$0xff]
        %v370 = vld [vmem:[%s322 + $0x178] sm:$0xff]
        %v371 = vld [vmem:[%s322 + $0x180] sm:$0xff]
        %v376 = vrot.slane %v318, 1
        %v377 = vrot.slane %v319, 1
        %v378 = vrot.slane %v320, 1
        %v379 = vrot.slane %v321, 1
        %v383 = vsel %vm172, %v379, 0
        %385 = vmatpush.msra.mxu0 %v338
        %386 = vmatpush.msra.mxu0 %v337
        %387 = vmatpush.msra.mxu0 %v336
        %388 = vmatpush.msra.mxu0 %v335
        %389 = vmatpush.msra.mxu0 %v334
        %390 = vmatpush.msra.mxu0 %v333
        %391 = vmatpush.msra.mxu0 %v332
        %392 = vmatpush.msra.mxu0 %v331
        %393 = vmatpush.msra.mxu0 %v330
        %394 = vmatpush.msra.mxu0 %v329
        %395 = vmatpush.msra.mxu0 %v328
        %396 = vmatpush.msra.mxu0 %v327
        %397 = vmatpush.msra.mxu0 %v326
        %398 = vmatpush.msra.mxu0 %v325
        %399 = vmatpush.msra.mxu0 %v324
        %400 = vmatpush.msra.mxu0 %v323
        %401 = vmatmul.f32.gmra.mxu0 %v376
        %v402 = vpop.f32.mrf.mxu0
        %v403 = vadd.f32 0.0, %v402
        %404 = vdwg.mxu0
        %405 = vmatpush.msra.mxu0 %v354
        %406 = vmatpush.msra.mxu0 %v353
        %407 = vmatpush.msra.mxu0 %v352
        %408 = vmatpush.msra.mxu0 %v351
        %409 = vmatpush.msra.mxu0 %v350
        %410 = vmatpush.msra.mxu0 %v349
        %411 = vmatpush.msra.mxu0 %v348
        %412 = vmatpush.msra.mxu0 %v347
        %413 = vmatpush.msra.mxu0 %v346
        %414 = vmatpush.msra.mxu0 %v345
        %415 = vmatpush.msra.mxu0 %v344
        %416 = vmatpush.msra.mxu0 %v343
        %417 = vmatpush.msra.mxu0 %v342
        %418 = vmatpush.msra.mxu0 %v341
        %419 = vmatpush.msra.mxu0 %v340
        %420 = vmatpush.msra.mxu0 %v339
        %421 = vmatmul.f32.gmra.mxu0 %v377
        %v422 = vpop.f32.mrf.mxu0
        %v423 = vadd.f32 %v403, %v422
        %424 = vdwg.mxu0
        %425 = vmatpush.msra.mxu0 %v370
        %426 = vmatpush.msra.mxu0 %v369
        %427 = vmatpush.msra.mxu0 %v368
        %428 = vmatpush.msra.mxu0 %v367
        %429 = vmatpush.msra.mxu0 %v366
        %430 = vmatpush.msra.mxu0 %v365
        %431 = vmatpush.msra.mxu0 %v364
        %432 = vmatpush.msra.mxu0 %v363
        %433 = vmatpush.msra.mxu0 %v362
        %434 = vmatpush.msra.mxu0 %v361
        %435 = vmatpush.msra.mxu0 %v360
        %436 = vmatpush.msra.mxu0 %v359
        %437 = vmatpush.msra.mxu0 %v358
        %438 = vmatpush.msra.mxu0 %v357
        %439 = vmatpush.msra.mxu0 %v356
        %440 = vmatpush.msra.mxu0 %v355
        %441 = vmatmul.f32.gmra.mxu0 %v378
        %v442 = vpop.f32.mrf.mxu0
        %v443 = vadd.f32 %v423, %v442
        %444 = vdwg.mxu0
        %445 = vmatpush.msra.mxu0 0.0
        %446 = vmatpush.msra.mxu0 0.0
        %447 = vmatpush.msra.mxu0 0.0
        %448 = vmatpush.msra.mxu0 0.0
        %449 = vmatpush.msra.mxu0 0.0
        %450 = vmatpush.msra.mxu0 0.0
        %451 = vmatpush.msra.mxu0 0.0
        %452 = vmatpush.msra.mxu0 0.0
        %453 = vmatpush.msra.mxu0 0.0
        %454 = vmatpush.msra.mxu0 0.0
        %455 = vmatpush.msra.mxu0 0.0
        %456 = vmatpush.msra.mxu0 0.0
        %457 = vmatpush.msra.mxu0 0.0
        %458 = vmatpush.msra.mxu0 0.0
        %459 = vmatpush.msra.mxu0 0.0
        %460 = vmatpush.msra.mxu0 %v371
        %461 = vmatmul.f32.gmra.mxu0 %v383
        %v462 = vpop.f32.mrf.mxu0
        %v463 = vadd.f32 %v443, %v462
        %464 = vdwg.mxu0
        %v466 = vsel %vm172, %v268, 0
        %468 = vmatpush.msra.mxu0 %v284
        %469 = vmatpush.msra.mxu0 %v283
        %470 = vmatpush.msra.mxu0 %v282
        %471 = vmatpush.msra.mxu0 %v281
        %472 = vmatpush.msra.mxu0 %v280
        %473 = vmatpush.msra.mxu0 %v279
        %474 = vmatpush.msra.mxu0 %v278
        %475 = vmatpush.msra.mxu0 %v277
        %476 = vmatpush.msra.mxu0 %v276
        %477 = vmatpush.msra.mxu0 %v275
        %478 = vmatpush.msra.mxu0 %v274
        %479 = vmatpush.msra.mxu0 %v273
        %480 = vmatpush.msra.mxu0 %v272
        %481 = vmatpush.msra.mxu0 %v271
        %482 = vmatpush.msra.mxu0 %v270
        %483 = vmatpush.msra.mxu0 %v269
        %484 = vmatmul.f32.gmra.mxu0 %v265
        %v485 = vpop.f32.mrf.mxu0
        %v486 = vadd.f32 %v463, %v485
        %487 = vdwg.mxu0
        %488 = vmatpush.msra.mxu0 %v300
        %489 = vmatpush.msra.mxu0 %v299
        %490 = vmatpush.msra.mxu0 %v298
        %491 = vmatpush.msra.mxu0 %v297
        %492 = vmatpush.msra.mxu0 %v296
        %493 = vmatpush.msra.mxu0 %v295
        %494 = vmatpush.msra.mxu0 %v294
        %495 = vmatpush.msra.mxu0 %v293
        %496 = vmatpush.msra.mxu0 %v292
        %497 = vmatpush.msra.mxu0 %v291
        %498 = vmatpush.msra.mxu0 %v290
        %499 = vmatpush.msra.mxu0 %v289
        %500 = vmatpush.msra.mxu0 %v288
        %501 = vmatpush.msra.mxu0 %v287
        %502 = vmatpush.msra.mxu0 %v286
        %503 = vmatpush.msra.mxu0 %v285
        %504 = vmatmul.f32.gmra.mxu0 %v266
        %v505 = vpop.f32.mrf.mxu0
        %v506 = vadd.f32 %v486, %v505
        %507 = vdwg.mxu0
        %508 = vmatpush.msra.mxu0 %v316
        %509 = vmatpush.msra.mxu0 %v315
        %510 = vmatpush.msra.mxu0 %v314
        %511 = vmatpush.msra.mxu0 %v313
        %512 = vmatpush.msra.mxu0 %v312
        %513 = vmatpush.msra.mxu0 %v311
        %514 = vmatpush.msra.mxu0 %v310
        %515 = vmatpush.msra.mxu0 %v309
        %516 = vmatpush.msra.mxu0 %v308
        %517 = vmatpush.msra.mxu0 %v307
        %518 = vmatpush.msra.mxu0 %v306
        %519 = vmatpush.msra.mxu0 %v305
        %520 = vmatpush.msra.mxu0 %v304
        %521 = vmatpush.msra.mxu0 %v303
        %522 = vmatpush.msra.mxu0 %v302
        %523 = vmatpush.msra.mxu0 %v301
        %524 = vmatmul.f32.gmra.mxu0 %v267
        %v525 = vpop.f32.mrf.mxu0
        %v526 = vadd.f32 %v506, %v525
        %527 = vdwg.mxu0
        %528 = vmatpush.msra.mxu0 0.0
        %529 = vmatpush.msra.mxu0 0.0
        %530 = vmatpush.msra.mxu0 0.0
        %531 = vmatpush.msra.mxu0 0.0
        %532 = vmatpush.msra.mxu0 0.0
        %533 = vmatpush.msra.mxu0 0.0
        %534 = vmatpush.msra.mxu0 0.0
        %535 = vmatpush.msra.mxu0 0.0
        %536 = vmatpush.msra.mxu0 0.0
        %537 = vmatpush.msra.mxu0 0.0
        %538 = vmatpush.msra.mxu0 0.0
        %539 = vmatpush.msra.mxu0 0.0
        %540 = vmatpush.msra.mxu0 0.0
        %541 = vmatpush.msra.mxu0 0.0
        %542 = vmatpush.msra.mxu0 0.0
        %543 = vmatpush.msra.mxu0 %v317
        %544 = vmatmul.f32.gmra.mxu0 %v466
        %v545 = vpop.f32.mrf.mxu0
        %v546 = vadd.f32 %v526, %v545
        %547 = vdwg.mxu0
        %v548 = vld [vmem:[#allocation2] sm:$0x3c]
        %v549 = vld [vmem:[#allocation2 + $0x8] sm:$0x3c]
        %v550 = vld [vmem:[#allocation2 + $0x10] sm:$0x3c]
        %v551 = vld [vmem:[#allocation2 + $0x18] sm:$0x3c]
        %s552 = scalar_lea.vmem %s0, 784
        %v553 = vld [vmem:[%s552] sm:$0xff]
        %v554 = vld [vmem:[%s552 + $0x8] sm:$0xff]
        %v555 = vld [vmem:[%s552 + $0x10] sm:$0xff]
        %v556 = vld [vmem:[%s552 + $0x18] sm:$0xff]
        %v557 = vld [vmem:[%s552 + $0x20] sm:$0xff]
        %v558 = vld [vmem:[%s552 + $0x28] sm:$0xff]
        %v559 = vld [vmem:[%s552 + $0x30] sm:$0xff]
        %v560 = vld [vmem:[%s552 + $0x38] sm:$0xff]
        %v561 = vld [vmem:[%s552 + $0x40] sm:$0xff]
        %v562 = vld [vmem:[%s552 + $0x48] sm:$0xff]
        %v563 = vld [vmem:[%s552 + $0x50] sm:$0xff]
        %v564 = vld [vmem:[%s552 + $0x58] sm:$0xff]
        %v565 = vld [vmem:[%s552 + $0x60] sm:$0xff]
        %v566 = vld [vmem:[%s552 + $0x68] sm:$0xff]
        %v567 = vld [vmem:[%s552 + $0x70] sm:$0xff]
        %v568 = vld [vmem:[%s552 + $0x78] sm:$0xff]
        %v569 = vld [vmem:[%s552 + $0x80] sm:$0xff]
        %v570 = vld [vmem:[%s552 + $0x88] sm:$0xff]
        %v571 = vld [vmem:[%s552 + $0x90] sm:$0xff]
        %v572 = vld [vmem:[%s552 + $0x98] sm:$0xff]
        %v573 = vld [vmem:[%s552 + $0xa0] sm:$0xff]
        %v574 = vld [vmem:[%s552 + $0xa8] sm:$0xff]
        %v575 = vld [vmem:[%s552 + $0xb0] sm:$0xff]
        %v576 = vld [vmem:[%s552 + $0xb8] sm:$0xff]
        %v577 = vld [vmem:[%s552 + $0xc0] sm:$0xff]
        %v578 = vld [vmem:[%s552 + $0xc8] sm:$0xff]
        %v579 = vld [vmem:[%s552 + $0xd0] sm:$0xff]
        %v580 = vld [vmem:[%s552 + $0xd8] sm:$0xff]
        %v581 = vld [vmem:[%s552 + $0xe0] sm:$0xff]
        %v582 = vld [vmem:[%s552 + $0xe8] sm:$0xff]
        %v583 = vld [vmem:[%s552 + $0xf0] sm:$0xff]
        %v584 = vld [vmem:[%s552 + $0xf8] sm:$0xff]
        %v585 = vld [vmem:[%s552 + $0x100] sm:$0xff]
        %v586 = vld [vmem:[%s552 + $0x108] sm:$0xff]
        %v587 = vld [vmem:[%s552 + $0x110] sm:$0xff]
        %v588 = vld [vmem:[%s552 + $0x118] sm:$0xff]
        %v589 = vld [vmem:[%s552 + $0x120] sm:$0xff]
        %v590 = vld [vmem:[%s552 + $0x128] sm:$0xff]
        %v591 = vld [vmem:[%s552 + $0x130] sm:$0xff]
        %v592 = vld [vmem:[%s552 + $0x138] sm:$0xff]
        %v593 = vld [vmem:[%s552 + $0x140] sm:$0xff]
        %v594 = vld [vmem:[%s552 + $0x148] sm:$0xff]
        %v595 = vld [vmem:[%s552 + $0x150] sm:$0xff]
        %v596 = vld [vmem:[%s552 + $0x158] sm:$0xff]
        %v597 = vld [vmem:[%s552 + $0x160] sm:$0xff]
        %v598 = vld [vmem:[%s552 + $0x168] sm:$0xff]
        %v599 = vld [vmem:[%s552 + $0x170] sm:$0xff]
        %v600 = vld [vmem:[%s552 + $0x178] sm:$0xff]
        %v601 = vld [vmem:[%s552 + $0x180] sm:$0xff]
        %v606 = vrot.slane %v548, 2
        %v607 = vrot.slane %v549, 2
        %v608 = vrot.slane %v550, 2
        %v609 = vrot.slane %v551, 2
        %v613 = vsel %vm172, %v609, 0
        %615 = vmatpush.msra.mxu0 %v568
        %616 = vmatpush.msra.mxu0 %v567
        %617 = vmatpush.msra.mxu0 %v566
        %618 = vmatpush.msra.mxu0 %v565
        %619 = vmatpush.msra.mxu0 %v564
        %620 = vmatpush.msra.mxu0 %v563
        %621 = vmatpush.msra.mxu0 %v562
        %622 = vmatpush.msra.mxu0 %v561
        %623 = vmatpush.msra.mxu0 %v560
        %624 = vmatpush.msra.mxu0 %v559
        %625 = vmatpush.msra.mxu0 %v558
        %626 = vmatpush.msra.mxu0 %v557
        %627 = vmatpush.msra.mxu0 %v556
        %628 = vmatpush.msra.mxu0 %v555
        %629 = vmatpush.msra.mxu0 %v554
        %630 = vmatpush.msra.mxu0 %v553
        %631 = vmatmul.f32.gmra.mxu0 %v606
        %v632 = vpop.f32.mrf.mxu0
        %v633 = vadd.f32 0.0, %v632
        %634 = vdwg.mxu0
        %635 = vmatpush.msra.mxu0 %v584
        %636 = vmatpush.msra.mxu0 %v583
        %637 = vmatpush.msra.mxu0 %v582
        %638 = vmatpush.msra.mxu0 %v581
        %639 = vmatpush.msra.mxu0 %v580
        %640 = vmatpush.msra.mxu0 %v579
        %641 = vmatpush.msra.mxu0 %v578
        %642 = vmatpush.msra.mxu0 %v577
        %643 = vmatpush.msra.mxu0 %v576
        %644 = vmatpush.msra.mxu0 %v575
        %645 = vmatpush.msra.mxu0 %v574
        %646 = vmatpush.msra.mxu0 %v573
        %647 = vmatpush.msra.mxu0 %v572
        %648 = vmatpush.msra.mxu0 %v571
        %649 = vmatpush.msra.mxu0 %v570
        %650 = vmatpush.msra.mxu0 %v569
        %651 = vmatmul.f32.gmra.mxu0 %v607
        %v652 = vpop.f32.mrf.mxu0
        %v653 = vadd.f32 %v633, %v652
        %654 = vdwg.mxu0
        %655 = vmatpush.msra.mxu0 %v600
        %656 = vmatpush.msra.mxu0 %v599
        %657 = vmatpush.msra.mxu0 %v598
        %658 = vmatpush.msra.mxu0 %v597
        %659 = vmatpush.msra.mxu0 %v596
        %660 = vmatpush.msra.mxu0 %v595
        %661 = vmatpush.msra.mxu0 %v594
        %662 = vmatpush.msra.mxu0 %v593
        %663 = vmatpush.msra.mxu0 %v592
        %664 = vmatpush.msra.mxu0 %v591
        %665 = vmatpush.msra.mxu0 %v590
        %666 = vmatpush.msra.mxu0 %v589
        %667 = vmatpush.msra.mxu0 %v588
        %668 = vmatpush.msra.mxu0 %v587
        %669 = vmatpush.msra.mxu0 %v586
        %670 = vmatpush.msra.mxu0 %v585
        %671 = vmatmul.f32.gmra.mxu0 %v608
        %v672 = vpop.f32.mrf.mxu0
        %v673 = vadd.f32 %v653, %v672
        %674 = vdwg.mxu0
        %675 = vmatpush.msra.mxu0 0.0
        %676 = vmatpush.msra.mxu0 0.0
        %677 = vmatpush.msra.mxu0 0.0
        %678 = vmatpush.msra.mxu0 0.0
        %679 = vmatpush.msra.mxu0 0.0
        %680 = vmatpush.msra.mxu0 0.0
        %681 = vmatpush.msra.mxu0 0.0
        %682 = vmatpush.msra.mxu0 0.0
        %683 = vmatpush.msra.mxu0 0.0
        %684 = vmatpush.msra.mxu0 0.0
        %685 = vmatpush.msra.mxu0 0.0
        %686 = vmatpush.msra.mxu0 0.0
        %687 = vmatpush.msra.mxu0 0.0
        %688 = vmatpush.msra.mxu0 0.0
        %689 = vmatpush.msra.mxu0 0.0
        %690 = vmatpush.msra.mxu0 %v601
        %691 = vmatmul.f32.gmra.mxu0 %v613
        %v692 = vpop.f32.mrf.mxu0
        %v693 = vadd.f32 %v673, %v692
        %694 = vdwg.mxu0
        %v695 = vadd.f32 %v546, %v693
        %v696 = vld [vmem:[#allocation2] sm:$0x78]
        %v697 = vld [vmem:[#allocation2 + $0x8] sm:$0x78]
        %v698 = vld [vmem:[#allocation2 + $0x10] sm:$0x78]
        %v699 = vld [vmem:[#allocation2 + $0x18] sm:$0x78]
        %s700 = scalar_lea.vmem %s0, 1176
        %v701 = vld [vmem:[%s700] sm:$0xff]
        %v702 = vld [vmem:[%s700 + $0x8] sm:$0xff]
        %v703 = vld [vmem:[%s700 + $0x10] sm:$0xff]
        %v704 = vld [vmem:[%s700 + $0x18] sm:$0xff]
        %v705 = vld [vmem:[%s700 + $0x20] sm:$0xff]
        %v706 = vld [vmem:[%s700 + $0x28] sm:$0xff]
        %v707 = vld [vmem:[%s700 + $0x30] sm:$0xff]
        %v708 = vld [vmem:[%s700 + $0x38] sm:$0xff]
        %v709 = vld [vmem:[%s700 + $0x40] sm:$0xff]
        %v710 = vld [vmem:[%s700 + $0x48] sm:$0xff]
        %v711 = vld [vmem:[%s700 + $0x50] sm:$0xff]
        %v712 = vld [vmem:[%s700 + $0x58] sm:$0xff]
        %v713 = vld [vmem:[%s700 + $0x60] sm:$0xff]
        %v714 = vld [vmem:[%s700 + $0x68] sm:$0xff]
        %v715 = vld [vmem:[%s700 + $0x70] sm:$0xff]
        %v716 = vld [vmem:[%s700 + $0x78] sm:$0xff]
        %v717 = vld [vmem:[%s700 + $0x80] sm:$0xff]
        %v718 = vld [vmem:[%s700 + $0x88] sm:$0xff]
        %v719 = vld [vmem:[%s700 + $0x90] sm:$0xff]
        %v720 = vld [vmem:[%s700 + $0x98] sm:$0xff]
        %v721 = vld [vmem:[%s700 + $0xa0] sm:$0xff]
        %v722 = vld [vmem:[%s700 + $0xa8] sm:$0xff]
        %v723 = vld [vmem:[%s700 + $0xb0] sm:$0xff]
        %v724 = vld [vmem:[%s700 + $0xb8] sm:$0xff]
        %v725 = vld [vmem:[%s700 + $0xc0] sm:$0xff]
        %v726 = vld [vmem:[%s700 + $0xc8] sm:$0xff]
        %v727 = vld [vmem:[%s700 + $0xd0] sm:$0xff]
        %v728 = vld [vmem:[%s700 + $0xd8] sm:$0xff]
        %v729 = vld [vmem:[%s700 + $0xe0] sm:$0xff]
        %v730 = vld [vmem:[%s700 + $0xe8] sm:$0xff]
        %v731 = vld [vmem:[%s700 + $0xf0] sm:$0xff]
        %v732 = vld [vmem:[%s700 + $0xf8] sm:$0xff]
        %v733 = vld [vmem:[%s700 + $0x100] sm:$0xff]
        %v734 = vld [vmem:[%s700 + $0x108] sm:$0xff]
        %v735 = vld [vmem:[%s700 + $0x110] sm:$0xff]
        %v736 = vld [vmem:[%s700 + $0x118] sm:$0xff]
        %v737 = vld [vmem:[%s700 + $0x120] sm:$0xff]
        %v738 = vld [vmem:[%s700 + $0x128] sm:$0xff]
        %v739 = vld [vmem:[%s700 + $0x130] sm:$0xff]
        %v740 = vld [vmem:[%s700 + $0x138] sm:$0xff]
        %v741 = vld [vmem:[%s700 + $0x140] sm:$0xff]
        %v742 = vld [vmem:[%s700 + $0x148] sm:$0xff]
        %v743 = vld [vmem:[%s700 + $0x150] sm:$0xff]
        %v744 = vld [vmem:[%s700 + $0x158] sm:$0xff]
        %v745 = vld [vmem:[%s700 + $0x160] sm:$0xff]
        %v746 = vld [vmem:[%s700 + $0x168] sm:$0xff]
        %v747 = vld [vmem:[%s700 + $0x170] sm:$0xff]
        %v748 = vld [vmem:[%s700 + $0x178] sm:$0xff]
        %v749 = vld [vmem:[%s700 + $0x180] sm:$0xff]
        %v754 = vrot.slane %v696, 3
        %v755 = vrot.slane %v697, 3
        %v756 = vrot.slane %v698, 3
        %v757 = vrot.slane %v699, 3
        %v761 = vsel %vm172, %v757, 0
        %763 = vmatpush.msra.mxu0 %v716
        %764 = vmatpush.msra.mxu0 %v715
        %765 = vmatpush.msra.mxu0 %v714
        %766 = vmatpush.msra.mxu0 %v713
        %767 = vmatpush.msra.mxu0 %v712
        %768 = vmatpush.msra.mxu0 %v711
        %769 = vmatpush.msra.mxu0 %v710
        %770 = vmatpush.msra.mxu0 %v709
        %771 = vmatpush.msra.mxu0 %v708
        %772 = vmatpush.msra.mxu0 %v707
        %773 = vmatpush.msra.mxu0 %v706
        %774 = vmatpush.msra.mxu0 %v705
        %775 = vmatpush.msra.mxu0 %v704
        %776 = vmatpush.msra.mxu0 %v703
        %777 = vmatpush.msra.mxu0 %v702
        %778 = vmatpush.msra.mxu0 %v701
        %779 = vmatmul.f32.gmra.mxu0 %v754
        %v780 = vpop.f32.mrf.mxu0
        %v781 = vadd.f32 0.0, %v780
        %782 = vdwg.mxu0
        %783 = vmatpush.msra.mxu0 %v732
        %784 = vmatpush.msra.mxu0 %v731
        %785 = vmatpush.msra.mxu0 %v730
        %786 = vmatpush.msra.mxu0 %v729
        %787 = vmatpush.msra.mxu0 %v728
        %788 = vmatpush.msra.mxu0 %v727
        %789 = vmatpush.msra.mxu0 %v726
        %790 = vmatpush.msra.mxu0 %v725
        %791 = vmatpush.msra.mxu0 %v724
        %792 = vmatpush.msra.mxu0 %v723
        %793 = vmatpush.msra.mxu0 %v722
        %794 = vmatpush.msra.mxu0 %v721
        %795 = vmatpush.msra.mxu0 %v720
        %796 = vmatpush.msra.mxu0 %v719
        %797 = vmatpush.msra.mxu0 %v718
        %798 = vmatpush.msra.mxu0 %v717
        %799 = vmatmul.f32.gmra.mxu0 %v755
        %v800 = vpop.f32.mrf.mxu0
        %v801 = vadd.f32 %v781, %v800
        %802 = vdwg.mxu0
        %803 = vmatpush.msra.mxu0 %v748
        %804 = vmatpush.msra.mxu0 %v747
        %805 = vmatpush.msra.mxu0 %v746
        %806 = vmatpush.msra.mxu0 %v745
        %807 = vmatpush.msra.mxu0 %v744
        %808 = vmatpush.msra.mxu0 %v743
        %809 = vmatpush.msra.mxu0 %v742
        %810 = vmatpush.msra.mxu0 %v741
        %811 = vmatpush.msra.mxu0 %v740
        %812 = vmatpush.msra.mxu0 %v739
        %813 = vmatpush.msra.mxu0 %v738
        %814 = vmatpush.msra.mxu0 %v737
        %815 = vmatpush.msra.mxu0 %v736
        %816 = vmatpush.msra.mxu0 %v735
        %817 = vmatpush.msra.mxu0 %v734
        %818 = vmatpush.msra.mxu0 %v733
        %819 = vmatmul.f32.gmra.mxu0 %v756
        %v820 = vpop.f32.mrf.mxu0
        %v821 = vadd.f32 %v801, %v820
        %822 = vdwg.mxu0
        %823 = vmatpush.msra.mxu0 0.0
        %824 = vmatpush.msra.mxu0 0.0
        %825 = vmatpush.msra.mxu0 0.0
        %826 = vmatpush.msra.mxu0 0.0
        %827 = vmatpush.msra.mxu0 0.0
        %828 = vmatpush.msra.mxu0 0.0
        %829 = vmatpush.msra.mxu0 0.0
        %830 = vmatpush.msra.mxu0 0.0
        %831 = vmatpush.msra.mxu0 0.0
        %832 = vmatpush.msra.mxu0 0.0
        %833 = vmatpush.msra.mxu0 0.0
        %834 = vmatpush.msra.mxu0 0.0
        %835 = vmatpush.msra.mxu0 0.0
        %836 = vmatpush.msra.mxu0 0.0
        %837 = vmatpush.msra.mxu0 0.0
        %838 = vmatpush.msra.mxu0 %v749
        %839 = vmatmul.f32.gmra.mxu0 %v761
        %v840 = vpop.f32.mrf.mxu0
        %v841 = vadd.f32 %v821, %v840
        %842 = vdwg.mxu0
        %v843 = vadd.f32 %v695, %v841
        %v844 = vld [vmem:[#allocation2] sm:$0xf0]
        %v845 = vld [vmem:[#allocation2 + $0x8] sm:$0xf0]
        %v846 = vld [vmem:[#allocation2 + $0x10] sm:$0xf0]
        %v847 = vld [vmem:[#allocation2 + $0x18] sm:$0xf0]
        %s848 = scalar_lea.vmem %s0, 1568
        %v849 = vld [vmem:[%s848] sm:$0xff]
        %v850 = vld [vmem:[%s848 + $0x8] sm:$0xff]
        %v851 = vld [vmem:[%s848 + $0x10] sm:$0xff]
        %v852 = vld [vmem:[%s848 + $0x18] sm:$0xff]
        %v853 = vld [vmem:[%s848 + $0x20] sm:$0xff]
        %v854 = vld [vmem:[%s848 + $0x28] sm:$0xff]
        %v855 = vld [vmem:[%s848 + $0x30] sm:$0xff]
        %v856 = vld [vmem:[%s848 + $0x38] sm:$0xff]
        %v857 = vld [vmem:[%s848 + $0x40] sm:$0xff]
        %v858 = vld [vmem:[%s848 + $0x48] sm:$0xff]
        %v859 = vld [vmem:[%s848 + $0x50] sm:$0xff]
        %v860 = vld [vmem:[%s848 + $0x58] sm:$0xff]
        %v861 = vld [vmem:[%s848 + $0x60] sm:$0xff]
        %v862 = vld [vmem:[%s848 + $0x68] sm:$0xff]
        %v863 = vld [vmem:[%s848 + $0x70] sm:$0xff]
        %v864 = vld [vmem:[%s848 + $0x78] sm:$0xff]
        %v865 = vld [vmem:[%s848 + $0x80] sm:$0xff]
        %v866 = vld [vmem:[%s848 + $0x88] sm:$0xff]
        %v867 = vld [vmem:[%s848 + $0x90] sm:$0xff]
        %v868 = vld [vmem:[%s848 + $0x98] sm:$0xff]
        %v869 = vld [vmem:[%s848 + $0xa0] sm:$0xff]
        %v870 = vld [vmem:[%s848 + $0xa8] sm:$0xff]
        %v871 = vld [vmem:[%s848 + $0xb0] sm:$0xff]
        %v872 = vld [vmem:[%s848 + $0xb8] sm:$0xff]
        %v873 = vld [vmem:[%s848 + $0xc0] sm:$0xff]
        %v874 = vld [vmem:[%s848 + $0xc8] sm:$0xff]
        %v875 = vld [vmem:[%s848 + $0xd0] sm:$0xff]
        %v876 = vld [vmem:[%s848 + $0xd8] sm:$0xff]
        %v877 = vld [vmem:[%s848 + $0xe0] sm:$0xff]
        %v878 = vld [vmem:[%s848 + $0xe8] sm:$0xff]
        %v879 = vld [vmem:[%s848 + $0xf0] sm:$0xff]
        %v880 = vld [vmem:[%s848 + $0xf8] sm:$0xff]
        %v881 = vld [vmem:[%s848 + $0x100] sm:$0xff]
        %v882 = vld [vmem:[%s848 + $0x108] sm:$0xff]
        %v883 = vld [vmem:[%s848 + $0x110] sm:$0xff]
        %v884 = vld [vmem:[%s848 + $0x118] sm:$0xff]
        %v885 = vld [vmem:[%s848 + $0x120] sm:$0xff]
        %v886 = vld [vmem:[%s848 + $0x128] sm:$0xff]
        %v887 = vld [vmem:[%s848 + $0x130] sm:$0xff]
        %v888 = vld [vmem:[%s848 + $0x138] sm:$0xff]
        %v889 = vld [vmem:[%s848 + $0x140] sm:$0xff]
        %v890 = vld [vmem:[%s848 + $0x148] sm:$0xff]
        %v891 = vld [vmem:[%s848 + $0x150] sm:$0xff]
        %v892 = vld [vmem:[%s848 + $0x158] sm:$0xff]
        %v893 = vld [vmem:[%s848 + $0x160] sm:$0xff]
        %v894 = vld [vmem:[%s848 + $0x168] sm:$0xff]
        %v895 = vld [vmem:[%s848 + $0x170] sm:$0xff]
        %v896 = vld [vmem:[%s848 + $0x178] sm:$0xff]
        %v897 = vld [vmem:[%s848 + $0x180] sm:$0xff]
        %v902 = vrot.slane %v844, 4
        %v903 = vrot.slane %v845, 4
        %v904 = vrot.slane %v846, 4
        %v905 = vrot.slane %v847, 4
        %v909 = vsel %vm172, %v905, 0
        %911 = vmatpush.msra.mxu0 %v864
        %912 = vmatpush.msra.mxu0 %v863
        %913 = vmatpush.msra.mxu0 %v862
        %914 = vmatpush.msra.mxu0 %v861
        %915 = vmatpush.msra.mxu0 %v860
        %916 = vmatpush.msra.mxu0 %v859
        %917 = vmatpush.msra.mxu0 %v858
        %918 = vmatpush.msra.mxu0 %v857
        %919 = vmatpush.msra.mxu0 %v856
        %920 = vmatpush.msra.mxu0 %v855
        %921 = vmatpush.msra.mxu0 %v854
        %922 = vmatpush.msra.mxu0 %v853
        %923 = vmatpush.msra.mxu0 %v852
        %924 = vmatpush.msra.mxu0 %v851
        %925 = vmatpush.msra.mxu0 %v850
        %926 = vmatpush.msra.mxu0 %v849
        %927 = vmatmul.f32.gmra.mxu0 %v902
        %v928 = vpop.f32.mrf.mxu0
        %v929 = vadd.f32 0.0, %v928
        %930 = vdwg.mxu0
        %931 = vmatpush.msra.mxu0 %v880
        %932 = vmatpush.msra.mxu0 %v879
        %933 = vmatpush.msra.mxu0 %v878
        %934 = vmatpush.msra.mxu0 %v877
        %935 = vmatpush.msra.mxu0 %v876
        %936 = vmatpush.msra.mxu0 %v875
        %937 = vmatpush.msra.mxu0 %v874
        %938 = vmatpush.msra.mxu0 %v873
        %939 = vmatpush.msra.mxu0 %v872
        %940 = vmatpush.msra.mxu0 %v871
        %941 = vmatpush.msra.mxu0 %v870
        %942 = vmatpush.msra.mxu0 %v869
        %943 = vmatpush.msra.mxu0 %v868
        %944 = vmatpush.msra.mxu0 %v867
        %945 = vmatpush.msra.mxu0 %v866
        %946 = vmatpush.msra.mxu0 %v865
        %947 = vmatmul.f32.gmra.mxu0 %v903
        %v948 = vpop.f32.mrf.mxu0
        %v949 = vadd.f32 %v929, %v948
        %950 = vdwg.mxu0
        %951 = vmatpush.msra.mxu0 %v896
        %952 = vmatpush.msra.mxu0 %v895
        %953 = vmatpush.msra.mxu0 %v894
        %954 = vmatpush.msra.mxu0 %v893
        %955 = vmatpush.msra.mxu0 %v892
        %956 = vmatpush.msra.mxu0 %v891
        %957 = vmatpush.msra.mxu0 %v890
        %958 = vmatpush.msra.mxu0 %v889
        %959 = vmatpush.msra.mxu0 %v888
        %960 = vmatpush.msra.mxu0 %v887
        %961 = vmatpush.msra.mxu0 %v886
        %962 = vmatpush.msra.mxu0 %v885
        %963 = vmatpush.msra.mxu0 %v884
        %964 = vmatpush.msra.mxu0 %v883
        %965 = vmatpush.msra.mxu0 %v882
        %966 = vmatpush.msra.mxu0 %v881
        %967 = vmatmul.f32.gmra.mxu0 %v904
        %v968 = vpop.f32.mrf.mxu0
        %v969 = vadd.f32 %v949, %v968
        %970 = vdwg.mxu0
        %971 = vmatpush.msra.mxu0 0.0
        %972 = vmatpush.msra.mxu0 0.0
        %973 = vmatpush.msra.mxu0 0.0
        %974 = vmatpush.msra.mxu0 0.0
        %975 = vmatpush.msra.mxu0 0.0
        %976 = vmatpush.msra.mxu0 0.0
        %977 = vmatpush.msra.mxu0 0.0
        %978 = vmatpush.msra.mxu0 0.0
        %979 = vmatpush.msra.mxu0 0.0
        %980 = vmatpush.msra.mxu0 0.0
        %981 = vmatpush.msra.mxu0 0.0
        %982 = vmatpush.msra.mxu0 0.0
        %983 = vmatpush.msra.mxu0 0.0
        %984 = vmatpush.msra.mxu0 0.0
        %985 = vmatpush.msra.mxu0 0.0
        %986 = vmatpush.msra.mxu0 %v897
        %987 = vmatmul.f32.gmra.mxu0 %v909
        %v988 = vpop.f32.mrf.mxu0
        %v989 = vadd.f32 %v969, %v988
        %990 = vdwg.mxu0
        %v991 = vadd.f32 %v843, %v989
        %v992 = vld [vmem:[#allocation2] sm:$0xe0]
        %v993 = vld [vmem:[#allocation2 + $0x8] sm:$0xe0]
        %v994 = vld [vmem:[#allocation2 + $0x10] sm:$0xe0]
        %v995 = vld [vmem:[#allocation2 + $0x18] sm:$0xe0]
        %v996 = vld [vmem:[#allocation2 + $0x20] sm:$0x1]
        %v997 = vld [vmem:[#allocation2 + $0x28] sm:$0x1]
        %v998 = vld [vmem:[#allocation2 + $0x30] sm:$0x1]
        %v999 = vld [vmem:[#allocation2 + $0x38] sm:$0x1]
        %s1000 = scalar_lea.vmem %s0, 1960
        %v1001 = vld [vmem:[%s1000] sm:$0xff]
        %v1002 = vld [vmem:[%s1000 + $0x8] sm:$0xff]
        %v1003 = vld [vmem:[%s1000 + $0x10] sm:$0xff]
        %v1004 = vld [vmem:[%s1000 + $0x18] sm:$0xff]
        %v1005 = vld [vmem:[%s1000 + $0x20] sm:$0xff]
        %v1006 = vld [vmem:[%s1000 + $0x28] sm:$0xff]
        %v1007 = vld [vmem:[%s1000 + $0x30] sm:$0xff]
        %v1008 = vld [vmem:[%s1000 + $0x38] sm:$0xff]
        %v1009 = vld [vmem:[%s1000 + $0x40] sm:$0xff]
        %v1010 = vld [vmem:[%s1000 + $0x48] sm:$0xff]
        %v1011 = vld [vmem:[%s1000 + $0x50] sm:$0xff]
        %v1012 = vld [vmem:[%s1000 + $0x58] sm:$0xff]
        %v1013 = vld [vmem:[%s1000 + $0x60] sm:$0xff]
        %v1014 = vld [vmem:[%s1000 + $0x68] sm:$0xff]
        %v1015 = vld [vmem:[%s1000 + $0x70] sm:$0xff]
        %v1016 = vld [vmem:[%s1000 + $0x78] sm:$0xff]
        %v1017 = vld [vmem:[%s1000 + $0x80] sm:$0xff]
        %v1018 = vld [vmem:[%s1000 + $0x88] sm:$0xff]
        %v1019 = vld [vmem:[%s1000 + $0x90] sm:$0xff]
        %v1020 = vld [vmem:[%s1000 + $0x98] sm:$0xff]
        %v1021 = vld [vmem:[%s1000 + $0xa0] sm:$0xff]
        %v1022 = vld [vmem:[%s1000 + $0xa8] sm:$0xff]
        %v1023 = vld [vmem:[%s1000 + $0xb0] sm:$0xff]
        %v1024 = vld [vmem:[%s1000 + $0xb8] sm:$0xff]
        %v1025 = vld [vmem:[%s1000 + $0xc0] sm:$0xff]
        %v1026 = vld [vmem:[%s1000 + $0xc8] sm:$0xff]
        %v1027 = vld [vmem:[%s1000 + $0xd0] sm:$0xff]
        %v1028 = vld [vmem:[%s1000 + $0xd8] sm:$0xff]
        %v1029 = vld [vmem:[%s1000 + $0xe0] sm:$0xff]
        %v1030 = vld [vmem:[%s1000 + $0xe8] sm:$0xff]
        %v1031 = vld [vmem:[%s1000 + $0xf0] sm:$0xff]
        %v1032 = vld [vmem:[%s1000 + $0xf8] sm:$0xff]
        %v1033 = vld [vmem:[%s1000 + $0x100] sm:$0xff]
        %v1034 = vld [vmem:[%s1000 + $0x108] sm:$0xff]
        %v1035 = vld [vmem:[%s1000 + $0x110] sm:$0xff]
        %v1036 = vld [vmem:[%s1000 + $0x118] sm:$0xff]
        %v1037 = vld [vmem:[%s1000 + $0x120] sm:$0xff]
        %v1038 = vld [vmem:[%s1000 + $0x128] sm:$0xff]
        %v1039 = vld [vmem:[%s1000 + $0x130] sm:$0xff]
        %v1040 = vld [vmem:[%s1000 + $0x138] sm:$0xff]
        %v1041 = vld [vmem:[%s1000 + $0x140] sm:$0xff]
        %v1042 = vld [vmem:[%s1000 + $0x148] sm:$0xff]
        %v1043 = vld [vmem:[%s1000 + $0x150] sm:$0xff]
        %v1044 = vld [vmem:[%s1000 + $0x158] sm:$0xff]
        %v1045 = vld [vmem:[%s1000 + $0x160] sm:$0xff]
        %v1046 = vld [vmem:[%s1000 + $0x168] sm:$0xff]
        %v1047 = vld [vmem:[%s1000 + $0x170] sm:$0xff]
        %v1048 = vld [vmem:[%s1000 + $0x178] sm:$0xff]
        %v1049 = vld [vmem:[%s1000 + $0x180] sm:$0xff]
        %vm1058 = vcmask 1042432
        %v1059 = vrot.slane %v992, 5
        %v1060 = vrot.slane %v996, 5
        %v1061 = vsel %vm1058, %v1059, %v1060
        %v1062 = vrot.slane %v993, 5
        %v1063 = vrot.slane %v997, 5
        %v1064 = vsel %vm1058, %v1062, %v1063
        %v1065 = vrot.slane %v994, 5
        %v1066 = vrot.slane %v998, 5
        %v1067 = vsel %vm1058, %v1065, %v1066
        %v1068 = vrot.slane %v995, 5
        %v1069 = vrot.slane %v999, 5
        %v1070 = vsel %vm1058, %v1068, %v1069
        %v1074 = vsel %vm172, %v1070, 0
        %1076 = vmatpush.msra.mxu0 %v1016
        %1077 = vmatpush.msra.mxu0 %v1015
        %1078 = vmatpush.msra.mxu0 %v1014
        %1079 = vmatpush.msra.mxu0 %v1013
        %1080 = vmatpush.msra.mxu0 %v1012
        %1081 = vmatpush.msra.mxu0 %v1011
        %1082 = vmatpush.msra.mxu0 %v1010
        %1083 = vmatpush.msra.mxu0 %v1009
        %1084 = vmatpush.msra.mxu0 %v1008
        %1085 = vmatpush.msra.mxu0 %v1007
        %1086 = vmatpush.msra.mxu0 %v1006
        %1087 = vmatpush.msra.mxu0 %v1005
        %1088 = vmatpush.msra.mxu0 %v1004
        %1089 = vmatpush.msra.mxu0 %v1003
        %1090 = vmatpush.msra.mxu0 %v1002
        %1091 = vmatpush.msra.mxu0 %v1001
        %1092 = vmatmul.f32.gmra.mxu0 %v1061
        %v1093 = vpop.f32.mrf.mxu0
        %v1094 = vadd.f32 0.0, %v1093
        %1095 = vdwg.mxu0
        %1096 = vmatpush.msra.mxu0 %v1032
        %1097 = vmatpush.msra.mxu0 %v1031
        %1098 = vmatpush.msra.mxu0 %v1030
        %1099 = vmatpush.msra.mxu0 %v1029
        %1100 = vmatpush.msra.mxu0 %v1028
        %1101 = vmatpush.msra.mxu0 %v1027
        %1102 = vmatpush.msra.mxu0 %v1026
        %1103 = vmatpush.msra.mxu0 %v1025
        %1104 = vmatpush.msra.mxu0 %v1024
        %1105 = vmatpush.msra.mxu0 %v1023
        %1106 = vmatpush.msra.mxu0 %v1022
        %1107 = vmatpush.msra.mxu0 %v1021
        %1108 = vmatpush.msra.mxu0 %v1020
        %1109 = vmatpush.msra.mxu0 %v1019
        %1110 = vmatpush.msra.mxu0 %v1018
        %1111 = vmatpush.msra.mxu0 %v1017
        %1112 = vmatmul.f32.gmra.mxu0 %v1064
        %v1113 = vpop.f32.mrf.mxu0
        %v1114 = vadd.f32 %v1094, %v1113
        %1115 = vdwg.mxu0
        %1116 = vmatpush.msra.mxu0 %v1048
        %1117 = vmatpush.msra.mxu0 %v1047
        %1118 = vmatpush.msra.mxu0 %v1046
        %1119 = vmatpush.msra.mxu0 %v1045
        %1120 = vmatpush.msra.mxu0 %v1044
        %1121 = vmatpush.msra.mxu0 %v1043
        %1122 = vmatpush.msra.mxu0 %v1042
        %1123 = vmatpush.msra.mxu0 %v1041
        %1124 = vmatpush.msra.mxu0 %v1040
        %1125 = vmatpush.msra.mxu0 %v1039
        %1126 = vmatpush.msra.mxu0 %v1038
        %1127 = vmatpush.msra.mxu0 %v1037
        %1128 = vmatpush.msra.mxu0 %v1036
        %1129 = vmatpush.msra.mxu0 %v1035
        %1130 = vmatpush.msra.mxu0 %v1034
        %1131 = vmatpush.msra.mxu0 %v1033
        %1132 = vmatmul.f32.gmra.mxu0 %v1067
        %v1133 = vpop.f32.mrf.mxu0
        %v1134 = vadd.f32 %v1114, %v1133
        %1135 = vdwg.mxu0
        %1136 = vmatpush.msra.mxu0 0.0
        %1137 = vmatpush.msra.mxu0 0.0
        %1138 = vmatpush.msra.mxu0 0.0
        %1139 = vmatpush.msra.mxu0 0.0
        %1140 = vmatpush.msra.mxu0 0.0
        %1141 = vmatpush.msra.mxu0 0.0
        %1142 = vmatpush.msra.mxu0 0.0
        %1143 = vmatpush.msra.mxu0 0.0
        %1144 = vmatpush.msra.mxu0 0.0
        %1145 = vmatpush.msra.mxu0 0.0
        %1146 = vmatpush.msra.mxu0 0.0
        %1147 = vmatpush.msra.mxu0 0.0
        %1148 = vmatpush.msra.mxu0 0.0
        %1149 = vmatpush.msra.mxu0 0.0
        %1150 = vmatpush.msra.mxu0 0.0
        %1151 = vmatpush.msra.mxu0 %v1049
        %1152 = vmatmul.f32.gmra.mxu0 %v1074
        %v1153 = vpop.f32.mrf.mxu0
        %v1154 = vadd.f32 %v1134, %v1153
        %1155 = vdwg.mxu0
        %v1156 = vadd.f32 %v991, %v1154
        %v1157 = vld [vmem:[#allocation2] sm:$0xc0]
        %v1158 = vld [vmem:[#allocation2 + $0x8] sm:$0xc0]
        %v1159 = vld [vmem:[#allocation2 + $0x10] sm:$0xc0]
        %v1160 = vld [vmem:[#allocation2 + $0x18] sm:$0xc0]
        %v1161 = vld [vmem:[#allocation2 + $0x20] sm:$0x3]
        %v1162 = vld [vmem:[#allocation2 + $0x28] sm:$0x3]
        %v1163 = vld [vmem:[#allocation2 + $0x30] sm:$0x3]
        %v1164 = vld [vmem:[#allocation2 + $0x38] sm:$0x3]
        %s1165 = scalar_lea.vmem %s0, 2352
        %v1166 = vld [vmem:[%s1165] sm:$0xff]
        %v1167 = vld [vmem:[%s1165 + $0x8] sm:$0xff]
        %v1168 = vld [vmem:[%s1165 + $0x10] sm:$0xff]
        %v1169 = vld [vmem:[%s1165 + $0x18] sm:$0xff]
        %v1170 = vld [vmem:[%s1165 + $0x20] sm:$0xff]
        %v1171 = vld [vmem:[%s1165 + $0x28] sm:$0xff]
        %v1172 = vld [vmem:[%s1165 + $0x30] sm:$0xff]
        %v1173 = vld [vmem:[%s1165 + $0x38] sm:$0xff]
        %v1174 = vld [vmem:[%s1165 + $0x40] sm:$0xff]
        %v1175 = vld [vmem:[%s1165 + $0x48] sm:$0xff]
        %v1176 = vld [vmem:[%s1165 + $0x50] sm:$0xff]
        %v1177 = vld [vmem:[%s1165 + $0x58] sm:$0xff]
        %v1178 = vld [vmem:[%s1165 + $0x60] sm:$0xff]
        %v1179 = vld [vmem:[%s1165 + $0x68] sm:$0xff]
        %v1180 = vld [vmem:[%s1165 + $0x70] sm:$0xff]
        %v1181 = vld [vmem:[%s1165 + $0x78] sm:$0xff]
        %v1182 = vld [vmem:[%s1165 + $0x80] sm:$0xff]
        %v1183 = vld [vmem:[%s1165 + $0x88] sm:$0xff]
        %v1184 = vld [vmem:[%s1165 + $0x90] sm:$0xff]
        %v1185 = vld [vmem:[%s1165 + $0x98] sm:$0xff]
        %v1186 = vld [vmem:[%s1165 + $0xa0] sm:$0xff]
        %v1187 = vld [vmem:[%s1165 + $0xa8] sm:$0xff]
        %v1188 = vld [vmem:[%s1165 + $0xb0] sm:$0xff]
        %v1189 = vld [vmem:[%s1165 + $0xb8] sm:$0xff]
        %v1190 = vld [vmem:[%s1165 + $0xc0] sm:$0xff]
        %v1191 = vld [vmem:[%s1165 + $0xc8] sm:$0xff]
        %v1192 = vld [vmem:[%s1165 + $0xd0] sm:$0xff]
        %v1193 = vld [vmem:[%s1165 + $0xd8] sm:$0xff]
        %v1194 = vld [vmem:[%s1165 + $0xe0] sm:$0xff]
        %v1195 = vld [vmem:[%s1165 + $0xe8] sm:$0xff]
        %v1196 = vld [vmem:[%s1165 + $0xf0] sm:$0xff]
        %v1197 = vld [vmem:[%s1165 + $0xf8] sm:$0xff]
        %v1198 = vld [vmem:[%s1165 + $0x100] sm:$0xff]
        %v1199 = vld [vmem:[%s1165 + $0x108] sm:$0xff]
        %v1200 = vld [vmem:[%s1165 + $0x110] sm:$0xff]
        %v1201 = vld [vmem:[%s1165 + $0x118] sm:$0xff]
        %v1202 = vld [vmem:[%s1165 + $0x120] sm:$0xff]
        %v1203 = vld [vmem:[%s1165 + $0x128] sm:$0xff]
        %v1204 = vld [vmem:[%s1165 + $0x130] sm:$0xff]
        %v1205 = vld [vmem:[%s1165 + $0x138] sm:$0xff]
        %v1206 = vld [vmem:[%s1165 + $0x140] sm:$0xff]
        %v1207 = vld [vmem:[%s1165 + $0x148] sm:$0xff]
        %v1208 = vld [vmem:[%s1165 + $0x150] sm:$0xff]
        %v1209 = vld [vmem:[%s1165 + $0x158] sm:$0xff]
        %v1210 = vld [vmem:[%s1165 + $0x160] sm:$0xff]
        %v1211 = vld [vmem:[%s1165 + $0x168] sm:$0xff]
        %v1212 = vld [vmem:[%s1165 + $0x170] sm:$0xff]
        %v1213 = vld [vmem:[%s1165 + $0x178] sm:$0xff]
        %v1214 = vld [vmem:[%s1165 + $0x180] sm:$0xff]
        %vm1223 = vcmask 1041408
        %v1224 = vrot.slane %v1157, 6
        %v1225 = vrot.slane %v1161, 6
        %v1226 = vsel %vm1223, %v1224, %v1225
        %v1227 = vrot.slane %v1158, 6
        %v1228 = vrot.slane %v1162, 6
        %v1229 = vsel %vm1223, %v1227, %v1228
        %v1230 = vrot.slane %v1159, 6
        %v1231 = vrot.slane %v1163, 6
        %v1232 = vsel %vm1223, %v1230, %v1231
        %v1233 = vrot.slane %v1160, 6
        %v1234 = vrot.slane %v1164, 6
        %v1235 = vsel %vm1223, %v1233, %v1234
        %v1239 = vsel %vm172, %v1235, 0
        %1241 = vmatpush.msra.mxu0 %v1181
        %1242 = vmatpush.msra.mxu0 %v1180
        %1243 = vmatpush.msra.mxu0 %v1179
        %1244 = vmatpush.msra.mxu0 %v1178
        %1245 = vmatpush.msra.mxu0 %v1177
        %1246 = vmatpush.msra.mxu0 %v1176
        %1247 = vmatpush.msra.mxu0 %v1175
        %1248 = vmatpush.msra.mxu0 %v1174
        %1249 = vmatpush.msra.mxu0 %v1173
        %1250 = vmatpush.msra.mxu0 %v1172
        %1251 = vmatpush.msra.mxu0 %v1171
        %1252 = vmatpush.msra.mxu0 %v1170
        %1253 = vmatpush.msra.mxu0 %v1169
        %1254 = vmatpush.msra.mxu0 %v1168
        %1255 = vmatpush.msra.mxu0 %v1167
        %1256 = vmatpush.msra.mxu0 %v1166
        %1257 = vmatmul.f32.gmra.mxu0 %v1226
        %v1258 = vpop.f32.mrf.mxu0
        %v1259 = vadd.f32 0.0, %v1258
        %1260 = vdwg.mxu0
        %1261 = vmatpush.msra.mxu0 %v1197
        %1262 = vmatpush.msra.mxu0 %v1196
        %1263 = vmatpush.msra.mxu0 %v1195
        %1264 = vmatpush.msra.mxu0 %v1194
        %1265 = vmatpush.msra.mxu0 %v1193
        %1266 = vmatpush.msra.mxu0 %v1192
        %1267 = vmatpush.msra.mxu0 %v1191
        %1268 = vmatpush.msra.mxu0 %v1190
        %1269 = vmatpush.msra.mxu0 %v1189
        %1270 = vmatpush.msra.mxu0 %v1188
        %1271 = vmatpush.msra.mxu0 %v1187
        %1272 = vmatpush.msra.mxu0 %v1186
        %1273 = vmatpush.msra.mxu0 %v1185
        %1274 = vmatpush.msra.mxu0 %v1184
        %1275 = vmatpush.msra.mxu0 %v1183
        %1276 = vmatpush.msra.mxu0 %v1182
        %1277 = vmatmul.f32.gmra.mxu0 %v1229
        %v1278 = vpop.f32.mrf.mxu0
        %v1279 = vadd.f32 %v1259, %v1278
        %1280 = vdwg.mxu0
        %1281 = vmatpush.msra.mxu0 %v1213
        %1282 = vmatpush.msra.mxu0 %v1212
        %1283 = vmatpush.msra.mxu0 %v1211
        %1284 = vmatpush.msra.mxu0 %v1210
        %1285 = vmatpush.msra.mxu0 %v1209
        %1286 = vmatpush.msra.mxu0 %v1208
        %1287 = vmatpush.msra.mxu0 %v1207
        %1288 = vmatpush.msra.mxu0 %v1206
        %1289 = vmatpush.msra.mxu0 %v1205
        %1290 = vmatpush.msra.mxu0 %v1204
        %1291 = vmatpush.msra.mxu0 %v1203
        %1292 = vmatpush.msra.mxu0 %v1202
        %1293 = vmatpush.msra.mxu0 %v1201
        %1294 = vmatpush.msra.mxu0 %v1200
        %1295 = vmatpush.msra.mxu0 %v1199
        %1296 = vmatpush.msra.mxu0 %v1198
        %1297 = vmatmul.f32.gmra.mxu0 %v1232
        %v1298 = vpop.f32.mrf.mxu0
        %v1299 = vadd.f32 %v1279, %v1298
        %1300 = vdwg.mxu0
        %1301 = vmatpush.msra.mxu0 0.0
        %1302 = vmatpush.msra.mxu0 0.0
        %1303 = vmatpush.msra.mxu0 0.0
        %1304 = vmatpush.msra.mxu0 0.0
        %1305 = vmatpush.msra.mxu0 0.0
        %1306 = vmatpush.msra.mxu0 0.0
        %1307 = vmatpush.msra.mxu0 0.0
        %1308 = vmatpush.msra.mxu0 0.0
        %1309 = vmatpush.msra.mxu0 0.0
        %1310 = vmatpush.msra.mxu0 0.0
        %1311 = vmatpush.msra.mxu0 0.0
        %1312 = vmatpush.msra.mxu0 0.0
        %1313 = vmatpush.msra.mxu0 0.0
        %1314 = vmatpush.msra.mxu0 0.0
        %1315 = vmatpush.msra.mxu0 0.0
        %1316 = vmatpush.msra.mxu0 %v1214
        %1317 = vmatmul.f32.gmra.mxu0 %v1239
        %v1318 = vpop.f32.mrf.mxu0
        %v1319 = vadd.f32 %v1299, %v1318
        %1320 = vdwg.mxu0
        %v1321 = vadd.f32 %v1156, %v1319
        %v1322 = vxor.u32 %v1321, 2147483648
        %v1323 = vmul.f32 %v1322, 1.442695
        %v1324 = vpow.pop %v1323
        %v1325 = vadd.f32 %v1324, 1.0
        %v1326 = vrcp.pop %v1325
        %v1327 = vmul.f32 %v1325, %v1326
        %v1328 = vsub.f32 1.0, %v1327
        %v1329 = vmul.f32 %v1326, %v1328
        %v1330 = vadd.f32 %v1326, %v1329
        %vm1331 = vweird.f32 %v1325
        %vm1332 = vweird.f32 %v1326
        %vm1333 = vmor %vm1331, %vm1332
        %v1334 = vsel %vm1333, %v1326, %v1330
        %v1335 = vand.u32 2147483647, %v1325
        %vm1336 = vcmp.eq.f32.partialorder %v1335, 8.507059e+37
        %v1337 = vand.u32 %v1325, 2147483648
        %v1338 = vor.u32 1.1754944e-38, %v1337
        %v1339 = vsel %vm1336, %v1338, %v1334
        %v1340 = vmul.f32 1.0, %v1339
        %1341 = vst.msk [vmem:[%s136] sm:$0xf] %vm146, %v1340
        %s1342 = sand.u32 %s71, 1
        %s1343 = scalar_lea.sflag [#allocation4], %s1342
        %s1344 = sand.u32 %s71, 1
        %s1345 = smul.addr %s1344, 4
        %s1346 = scalar_lea.vmem [#allocation3], %s1345
        // Predicated region
        $region29: #{tpu_custom_call.1} parent=27 // pred_check
          %p1347 = pneg %p81
        $region30: #{tpu_custom_call.1} parent=27 // pred_check_branch
          %1349 = sbr.rel (%p1347) target = $region32
        $region31: #{tpu_custom_call.1} parent=27 // pred_region
          %1351 = vsyncadd %s1343, 0
          %s1352 = smul.addr %s16, 4
          %s1353 = scalar_lea.hbm %s2, %s1352
          %s1355 = sshll.u32 %s1346, 4
          %s1356 = int_to_ptr.vmem [resolvable:$true] %s1355
          %s1357 = sshll.u32 %s1353, 4
          %s1358 = int_to_ptr.hbm [resolvable:$true] %s1357
          %1360 = dma.vmem_to_hbm [thread:$0]  %s1356, 64, %s1358, %s1343
        $region32: #{tpu_custom_call.1} parent=27 // pred_fallthru
          _
      $region28: #{tpu_custom_call.1} parent=5 // pred_fallthru
        _
      %p1361 = scmp.le.s32.totalorder 2, %s11
      // Predicated region
      $region33: #{tpu_custom_call.1} parent=5 // pred_check
        %p1362 = pneg %p1361
      $region34: #{tpu_custom_call.1} parent=5 // pred_check_branch
        %1364 = sbr.rel (%p1362) target = $region36
      $region35: #{tpu_custom_call.1} parent=5 // pred_region
        %s1365 = ssub.s32 %s11, 2
        // Predicated region
        $region37: #{tpu_custom_call.1} parent=35 // pred_check
          %p1366 = pneg %p87
        $region38: #{tpu_custom_call.1} parent=35 // pred_check_branch
          %1368 = sbr.rel (%p1366) target = $region40
        $region39: #{tpu_custom_call.1} parent=35 // pred_region
          %s1369 = sand.u32 %s72, 1
          %s1370 = scalar_lea.sflag [#allocation4], %s1369
          %s1371 = sand.u32 %s72, 1
          %s1372 = smul.addr %s1371, 4
          %s1373 = scalar_lea.vmem [#allocation3], %s1372
          %1375 = dma.done %s1370, 64
        $region40: #{tpu_custom_call.1} parent=35 // pred_fallthru
          _
      $region36: #{tpu_custom_call.1} parent=5 // pred_fallthru
        _
    $region6: #{tpu_custom_call.1} parent=1 // loop_footer
      %s15 = sadd.s32 1, %s11
    $region7: #{tpu_custom_call.1} parent=1 // loop_footer_branch
      %10 = sbr.rel target = $region3
    $region8: #{tpu_custom_call.1} parent=1 // loop_exit
      _
    %1376 = vsyncpa [#allocation4], 1
    %s1377 = scalar_lea.sflag [#allocation4], 1
    %1378 = vsyncpa %s1377, 1

</llo_original>
